<compile_context>
chip_gen: v7x
topology: tpu7x:2x2x1
jax: 0.10.0
libtpu: 0.0.40
codegen_flags: <defaults>
</compile_context>

<pallas_src>
import functools

import jax
import jax.numpy as jnp
from jax.experimental import pallas as pl
from jax.experimental.pallas import tpu as pltpu

_LN_EPS = 1e-5


def _layernorm(x, gamma, beta):
    mu = jnp.mean(x, axis=-1, keepdims=True)
    var = jnp.mean((x - mu) ** 2, axis=-1, keepdims=True)
    return (x - mu) * jax.lax.rsqrt(var + _LN_EPS) * gamma + beta


def _attn_kernel(x_ref, g1_ref, b1_ref, wq_ref, wk_ref, wv_ref,
                 wp_ref, bp_ref, o_ref, *, n_head):
    # x_ref: (1, T, C) = one batch element; weights resident across the grid.
    x = x_ref[0].astype(jnp.float32)                         # (T, C)
    T, C = x.shape
    hs = C // n_head
    scale = hs ** -0.5

    ln = _layernorm(x, g1_ref[...].astype(jnp.float32),
                    b1_ref[...].astype(jnp.float32))         # (T, C)

    q = jnp.dot(ln, wq_ref[...], preferred_element_type=jnp.float32)
    k = jnp.dot(ln, wk_ref[...], preferred_element_type=jnp.float32)
    v = jnp.dot(ln, wv_ref[...], preferred_element_type=jnp.float32)

    # Causal mask, built in-kernel (no tril buffer DMA needed).
    row = jax.lax.broadcasted_iota(jnp.int32, (T, T), 0)
    col = jax.lax.broadcasted_iota(jnp.int32, (T, T), 1)
    causal = row >= col

    wp = wp_ref[...].astype(jnp.float32)                     # (C, C)
    acc = jnp.zeros((T, C), jnp.float32)
    for h in range(n_head):                                  # static unroll
        sl = slice(h * hs, (h + 1) * hs)
        qh, kh, vh = q[:, sl], k[:, sl], v[:, sl]            # (T, hs)
        s = jax.lax.dot_general(qh, kh, (((1,), (1,)), ((), ())),
                                preferred_element_type=jnp.float32) * scale
        s = jnp.where(causal, s, -1e30)
        s = s - jnp.max(s, axis=-1, keepdims=True)
        p = jnp.exp(s)
        p = p * pl.reciprocal(jnp.sum(p, axis=-1, keepdims=True), approx=False)
        o_h = jnp.dot(p, vh, preferred_element_type=jnp.float32)   # (T, hs)
        # Fold the head directly into the output projection (== concat @ Wp).
        acc = acc + jnp.dot(o_h, wp[sl, :], preferred_element_type=jnp.float32)

    o_ref[0] = (x + acc + bp_ref[...].astype(jnp.float32)).astype(o_ref.dtype)


def _ffn_kernel(x_ref, g2_ref, b2_ref, w1_ref, c1_ref, w2_ref, c2_ref, o_ref):
    x = x_ref[0].astype(jnp.float32)                         # (T, C)
    ln = _layernorm(x, g2_ref[...].astype(jnp.float32),
                    b2_ref[...].astype(jnp.float32))
    h = jnp.dot(ln, w1_ref[...], preferred_element_type=jnp.float32)
    h = jnp.maximum(h + c1_ref[...].astype(jnp.float32), 0.0)      # ReLU
    y = jnp.dot(h, w2_ref[...], preferred_element_type=jnp.float32)
    y = y + c2_ref[...].astype(jnp.float32)
    o_ref[0] = (x + y).astype(o_ref.dtype)                   # residual


def transformer_block(x, params, *, n_head):
    """Pallas equivalent of Block.forward (dropout p=0 / eval mode)."""
    B, T, C = x.shape
    F = 4 * C
    itemsize = jnp.dtype(x.dtype).itemsize

    row_spec = pl.BlockSpec((1, T, C), lambda b: (b, 0, 0))

    def _const(shape):
        return pl.BlockSpec(shape, lambda b, _s=shape: tuple(0 for _ in _s))

    vecC, vecF = _const((1, C)), _const((1, F))
    matCC, matCF, matFC = _const((C, C)), _const((C, F)), _const((F, C))

    cparams = pltpu.CompilerParams(dimension_semantics=("parallel",))

    attn_cost = pl.CostEstimate(
        flops=B * (8 * T * C * C + 4 * n_head * T * T * (C // n_head)),
        transcendentals=B * n_head * T * T,
        bytes_accessed=(2 * B * T * C + 4 * C * C + 3 * C) * itemsize,
    )
    attn = pl.pallas_call(
        functools.partial(_attn_kernel, n_head=n_head),
        out_shape=jax.ShapeDtypeStruct((B, T, C), x.dtype),
        grid=(B,),
        in_specs=[row_spec, vecC, vecC, matCC, matCC, matCC, matCC, vecC],
        out_specs=row_spec,
        compiler_params=cparams,
        cost_estimate=attn_cost,
    )(x,
      params["ln1_g"].reshape(1, C), params["ln1_b"].reshape(1, C),
      params["wq"], params["wk"], params["wv"],
      params["wp"], params["bp"].reshape(1, C))

    ffn_cost = pl.CostEstimate(
        flops=B * (4 * T * C * F),
        transcendentals=0,
        bytes_accessed=(2 * B * T * C + 2 * C * F + F + 3 * C) * itemsize,
    )
    out = pl.pallas_call(
        _ffn_kernel,
        out_shape=jax.ShapeDtypeStruct((B, T, C), x.dtype),
        grid=(B,),
        in_specs=[row_spec, vecC, vecC, matCF, vecF, matFC, vecC],
        out_specs=row_spec,
        compiler_params=cparams,
        cost_estimate=ffn_cost,
    )(attn,
      params["ln2_g"].reshape(1, C), params["ln2_b"].reshape(1, C),
      params["w1"], params["b1"].reshape(1, F),
      params["w2"], params["b2"].reshape(1, C))
    return out


def _reference(x, params, *, n_head):
    """Pure-JAX reference mirroring the PyTorch Block.forward math."""
    B, T, C = x.shape
    hs = C // n_head

    def ln(v, g, b):
        mu = v.mean(-1, keepdims=True)
        var = ((v - mu) ** 2).mean(-1, keepdims=True)
        return (v - mu) / jnp.sqrt(var + _LN_EPS) * g + b

    x1 = ln(x, params["ln1_g"], params["ln1_b"])
    q, k, v = x1 @ params["wq"], x1 @ params["wk"], x1 @ params["wv"]
    mask = jnp.tril(jnp.ones((T, T), bool))
    outs = []
    for h in range(n_head):
        sl = slice(h * hs, (h + 1) * hs)
        s = jnp.einsum("btd,bsd->bts", q[..., sl], k[..., sl]) * hs ** -0.5
        s = jnp.where(mask, s, -jnp.inf)
        p = jax.nn.softmax(s, axis=-1)
        outs.append(jnp.einsum("bts,bsd->btd", p, v[..., sl]))
    attn = jnp.concatenate(outs, axis=-1)
    x = x + attn @ params["wp"] + params["bp"]
    x2 = ln(x, params["ln2_g"], params["ln2_b"])
    hdn = jax.nn.relu(x2 @ params["w1"] + params["b1"])
    return x + hdn @ params["w2"] + params["b2"]


if __name__ == "__main__":
    # Small shapes consistent with Block: batch=2, seq(block_size)=8,
    # n_embd=32, n_head=4 -> head_size=8, ffn hidden=128, dropout=0.
    B, T, C, n_head = 2, 8, 32, 4
    F = 4 * C

    key = jax.random.PRNGKey(0)
    ks = jax.random.split(key, 14)
    s = C ** -0.5
    params = dict(
        ln1_g=1.0 + 0.1 * jax.random.normal(ks[1], (C,), jnp.float32),
        ln1_b=0.1 * jax.random.normal(ks[2], (C,), jnp.float32),
        wq=s * jax.random.normal(ks[3], (C, C), jnp.float32),
        wk=s * jax.random.normal(ks[4], (C, C), jnp.float32),
        wv=s * jax.random.normal(ks[5], (C, C), jnp.float32),
        wp=s * jax.random.normal(ks[6], (C, C), jnp.float32),
        bp=0.1 * jax.random.normal(ks[7], (C,), jnp.float32),
        ln2_g=1.0 + 0.1 * jax.random.normal(ks[8], (C,), jnp.float32),
        ln2_b=0.1 * jax.random.normal(ks[9], (C,), jnp.float32),
        w1=s * jax.random.normal(ks[10], (C, F), jnp.float32),
        b1=0.1 * jax.random.normal(ks[11], (F,), jnp.float32),
        w2=(F ** -0.5) * jax.random.normal(ks[12], (F, C), jnp.float32),
        b2=0.1 * jax.random.normal(ks[13], (C,), jnp.float32),
    )
    x = jax.random.normal(ks[0], (B, T, C), jnp.float32)

    out = transformer_block(x, params, n_head=n_head)
    out = jax.block_until_ready(out)

    ref = _reference(x, params, n_head=n_head)
    assert out.shape == (B, T, C), out.shape
    err = float(jnp.max(jnp.abs(out - ref)))
    assert jnp.allclose(out, ref, atol=1e-3, rtol=1e-3), f"max abs err {err}"

    print("KERNEL_OK")
</pallas_src>

<mosaic_0001>
module attributes {stable_mosaic.version = 11 : i64} {
  func.func @_attn_kernel(%arg0: i32, %arg1: memref<1x8x32xf32, #tpu.memory_space<vmem>>, %arg2: memref<1x32xf32, #tpu.memory_space<vmem>>, %arg3: memref<1x32xf32, #tpu.memory_space<vmem>>, %arg4: memref<32x32xf32, #tpu.memory_space<vmem>>, %arg5: memref<32x32xf32, #tpu.memory_space<vmem>>, %arg6: memref<32x32xf32, #tpu.memory_space<vmem>>, %arg7: memref<32x32xf32, #tpu.memory_space<vmem>>, %arg8: memref<1x32xf32, #tpu.memory_space<vmem>>, %arg9: memref<1x8x32xf32, #tpu.memory_space<vmem>>) attributes {dimension_semantics = [#tpu.dimension_semantics<parallel>], iteration_bounds = array<i64: 2>, scalar_prefetch = 0 : i64, scratch_operands = 0 : i64, tpu.core_type = #tpu.core_type<tc>, window_params = [{transform_indices = @transform_0, window_bounds = array<i64: 1, 8, 32>}, {pipeline_mode = #tpu.pipeline_mode<synchronous>, transform_indices = @transform_1, window_bounds = array<i64: 1, 32>}, {pipeline_mode = #tpu.pipeline_mode<synchronous>, transform_indices = @transform_2, window_bounds = array<i64: 1, 32>}, {pipeline_mode = #tpu.pipeline_mode<synchronous>, transform_indices = @transform_3, window_bounds = array<i64: 32, 32>}, {pipeline_mode = #tpu.pipeline_mode<synchronous>, transform_indices = @transform_4, window_bounds = array<i64: 32, 32>}, {pipeline_mode = #tpu.pipeline_mode<synchronous>, transform_indices = @transform_5, window_bounds = array<i64: 32, 32>}, {pipeline_mode = #tpu.pipeline_mode<synchronous>, transform_indices = @transform_6, window_bounds = array<i64: 32, 32>}, {pipeline_mode = #tpu.pipeline_mode<synchronous>, transform_indices = @transform_7, window_bounds = array<i64: 1, 32>}, {transform_indices = @transform_8, window_bounds = array<i64: 1, 8, 32>}]} {
    %c0 = arith.constant 0 : index
    %c0_0 = arith.constant 0 : index
    %c0_1 = arith.constant 0 : index
    %0 = vector.load %arg1[%c0, %c0_0, %c0_1] : memref<1x8x32xf32, #tpu.memory_space<vmem>>, vector<1x8x32xf32>
    %1 = vector.shape_cast %0 : vector<1x8x32xf32> to vector<8x32xf32>
    %c0_2 = arith.constant 0 : index
    %c0_3 = arith.constant 0 : index
    %2 = vector.load %arg2[%c0_2, %c0_3] : memref<1x32xf32, #tpu.memory_space<vmem>>, vector<1x32xf32>
    %c0_4 = arith.constant 0 : index
    %c0_5 = arith.constant 0 : index
    %3 = vector.load %arg3[%c0_4, %c0_5] : memref<1x32xf32, #tpu.memory_space<vmem>>, vector<1x32xf32>
    %cst = arith.constant dense<0.000000e+00> : vector<8xf32>
    %4 = vector.multi_reduction <add>, %1, %cst [1] : vector<8x32xf32> to vector<8xf32>
    %5 = vector.shape_cast %4 : vector<8xf32> to vector<8x1xf32>
    %cst_6 = arith.constant 3.200000e+01 : f32
    %6 = vector.broadcast %cst_6 : f32 to vector<8x1xf32>
    %7 = arith.divf %5, %6 : vector<8x1xf32>
    %8 = vector.broadcast %7 : vector<8x1xf32> to vector<8x32xf32>
    %9 = arith.subf %1, %8 : vector<8x32xf32>
    %10 = arith.mulf %9, %9 : vector<8x32xf32>
    %cst_7 = arith.constant dense<0.000000e+00> : vector<8xf32>
    %11 = vector.multi_reduction <add>, %10, %cst_7 [1] : vector<8x32xf32> to vector<8xf32>
    %12 = vector.shape_cast %11 : vector<8xf32> to vector<8x1xf32>
    %cst_8 = arith.constant 3.200000e+01 : f32
    %13 = vector.broadcast %cst_8 : f32 to vector<8x1xf32>
    %14 = arith.divf %12, %13 : vector<8x1xf32>
    %15 = vector.broadcast %7 : vector<8x1xf32> to vector<8x32xf32>
    %16 = arith.subf %1, %15 : vector<8x32xf32>
    %cst_9 = arith.constant 9.99999974E-6 : f32
    %17 = vector.broadcast %cst_9 : f32 to vector<8x1xf32>
    %18 = arith.addf %14, %17 : vector<8x1xf32>
    %19 = math.rsqrt %18 : vector<8x1xf32>
    %20 = vector.broadcast %19 : vector<8x1xf32> to vector<8x32xf32>
    %21 = arith.mulf %16, %20 : vector<8x32xf32>
    %22 = vector.broadcast %2 : vector<1x32xf32> to vector<8x32xf32>
    %23 = arith.mulf %21, %22 : vector<8x32xf32>
    %24 = vector.broadcast %3 : vector<1x32xf32> to vector<8x32xf32>
    %25 = arith.addf %23, %24 : vector<8x32xf32>
    %c0_10 = arith.constant 0 : index
    %c0_11 = arith.constant 0 : index
    %26 = vector.load %arg4[%c0_10, %c0_11] : memref<32x32xf32, #tpu.memory_space<vmem>>, vector<32x32xf32>
    %cst_12 = arith.constant dense<0.000000e+00> : vector<8x32xf32>
    %27 = tpu.matmul %25, %26, %cst_12 {dimension_numbers = #tpu.dot_dimension_numbers<[1], [0], [0], [1], [0, 0, 1, 1], [], []>} : vector<8x32xf32>, vector<32x32xf32>, vector<8x32xf32> -> vector<8x32xf32>
    %c0_13 = arith.constant 0 : index
    %c0_14 = arith.constant 0 : index
    %28 = vector.load %arg5[%c0_13, %c0_14] : memref<32x32xf32, #tpu.memory_space<vmem>>, vector<32x32xf32>
    %cst_15 = arith.constant dense<0.000000e+00> : vector<8x32xf32>
    %29 = tpu.matmul %25, %28, %cst_15 {dimension_numbers = #tpu.dot_dimension_numbers<[1], [0], [0], [1], [0, 0, 1, 1], [], []>} : vector<8x32xf32>, vector<32x32xf32>, vector<8x32xf32> -> vector<8x32xf32>
    %c0_16 = arith.constant 0 : index
    %c0_17 = arith.constant 0 : index
    %30 = vector.load %arg6[%c0_16, %c0_17] : memref<32x32xf32, #tpu.memory_space<vmem>>, vector<32x32xf32>
    %cst_18 = arith.constant dense<0.000000e+00> : vector<8x32xf32>
    %31 = tpu.matmul %25, %30, %cst_18 {dimension_numbers = #tpu.dot_dimension_numbers<[1], [0], [0], [1], [0, 0, 1, 1], [], []>} : vector<8x32xf32>, vector<32x32xf32>, vector<8x32xf32> -> vector<8x32xf32>
    %32 = tpu.iota {dimensions = array<i32: 0>} : vector<8x8xi32>
    %33 = tpu.iota {dimensions = array<i32: 1>} : vector<8x8xi32>
    %34 = arith.cmpi sge, %32, %33 : vector<8x8xi32>
    %c0_19 = arith.constant 0 : index
    %c0_20 = arith.constant 0 : index
    %35 = vector.load %arg7[%c0_19, %c0_20] : memref<32x32xf32, #tpu.memory_space<vmem>>, vector<32x32xf32>
    %cst_21 = arith.constant 0.000000e+00 : f32
    %36 = vector.broadcast %cst_21 : f32 to vector<8x32xf32>
    %37 = vector.extract_strided_slice %27 {offsets = [0, 0], sizes = [8, 8], strides = [1, 1]} : vector<8x32xf32> to vector<8x8xf32>
    %38 = vector.extract_strided_slice %29 {offsets = [0, 0], sizes = [8, 8], strides = [1, 1]} : vector<8x32xf32> to vector<8x8xf32>
    %39 = vector.extract_strided_slice %31 {offsets = [0, 0], sizes = [8, 8], strides = [1, 1]} : vector<8x32xf32> to vector<8x8xf32>
    %cst_22 = arith.constant dense<0.000000e+00> : vector<8x8xf32>
    %40 = tpu.matmul %37, %38, %cst_22 {dimension_numbers = #tpu.dot_dimension_numbers<[1], [1], [0], [0], [0, 0, 1, 0], [], []>} : vector<8x8xf32>, vector<8x8xf32>, vector<8x8xf32> -> vector<8x8xf32>
    %cst_23 = arith.constant 0.353553385 : f32
    %41 = vector.broadcast %cst_23 : f32 to vector<8x8xf32>
    %42 = arith.mulf %40, %41 : vector<8x8xf32>
    %cst_24 = arith.constant -1.000000e+30 : f32
    %43 = vector.broadcast %cst_24 : f32 to vector<8x8xf32>
    %44 = arith.select %34, %42, %43 : vector<8x8xi1>, vector<8x8xf32>
    %cst_25 = arith.constant dense<0xFF800000> : vector<8xf32>
    %45 = vector.multi_reduction <maximumf>, %44, %cst_25 [1] : vector<8x8xf32> to vector<8xf32>
    %46 = vector.shape_cast %45 : vector<8xf32> to vector<8x1xf32>
    %47 = vector.broadcast %46 : vector<8x1xf32> to vector<8x8xf32>
    %48 = arith.subf %44, %47 : vector<8x8xf32>
    %49 = math.exp %48 : vector<8x8xf32>
    %cst_26 = arith.constant dense<0.000000e+00> : vector<8xf32>
    %50 = vector.multi_reduction <add>, %49, %cst_26 [1] : vector<8x8xf32> to vector<8xf32>
    %51 = vector.shape_cast %50 : vector<8xf32> to vector<8x1xf32>
    %52 = tpu.reciprocal %51 : vector<8x1xf32> -> vector<8x1xf32>
    %53 = vector.broadcast %52 : vector<8x1xf32> to vector<8x8xf32>
    %54 = arith.mulf %49, %53 : vector<8x8xf32>
    %cst_27 = arith.constant dense<0.000000e+00> : vector<8x8xf32>
    %55 = tpu.matmul %54, %39, %cst_27 {dimension_numbers = #tpu.dot_dimension_numbers<[1], [0], [0], [1], [0, 0, 1, 1], [], []>} : vector<8x8xf32>, vector<8x8xf32>, vector<8x8xf32> -> vector<8x8xf32>
    %56 = vector.extract_strided_slice %35 {offsets = [0, 0], sizes = [8, 32], strides = [1, 1]} : vector<32x32xf32> to vector<8x32xf32>
    %cst_28 = arith.constant dense<0.000000e+00> : vector<8x32xf32>
    %57 = tpu.matmul %55, %56, %cst_28 {dimension_numbers = #tpu.dot_dimension_numbers<[1], [0], [0], [1], [0, 0, 1, 1], [], []>} : vector<8x8xf32>, vector<8x32xf32>, vector<8x32xf32> -> vector<8x32xf32>
    %58 = arith.addf %36, %57 : vector<8x32xf32>
    %59 = vector.extract_strided_slice %27 {offsets = [0, 8], sizes = [8, 8], strides = [1, 1]} : vector<8x32xf32> to vector<8x8xf32>
    %60 = vector.extract_strided_slice %29 {offsets = [0, 8], sizes = [8, 8], strides = [1, 1]} : vector<8x32xf32> to vector<8x8xf32>
    %61 = vector.extract_strided_slice %31 {offsets = [0, 8], sizes = [8, 8], strides = [1, 1]} : vector<8x32xf32> to vector<8x8xf32>
    %cst_29 = arith.constant dense<0.000000e+00> : vector<8x8xf32>
    %62 = tpu.matmul %59, %60, %cst_29 {dimension_numbers = #tpu.dot_dimension_numbers<[1], [1], [0], [0], [0, 0, 1, 0], [], []>} : vector<8x8xf32>, vector<8x8xf32>, vector<8x8xf32> -> vector<8x8xf32>
    %cst_30 = arith.constant 0.353553385 : f32
    %63 = vector.broadcast %cst_30 : f32 to vector<8x8xf32>
    %64 = arith.mulf %62, %63 : vector<8x8xf32>
    %cst_31 = arith.constant -1.000000e+30 : f32
    %65 = vector.broadcast %cst_31 : f32 to vector<8x8xf32>
    %66 = arith.select %34, %64, %65 : vector<8x8xi1>, vector<8x8xf32>
    %cst_32 = arith.constant dense<0xFF800000> : vector<8xf32>
    %67 = vector.multi_reduction <maximumf>, %66, %cst_32 [1] : vector<8x8xf32> to vector<8xf32>
    %68 = vector.shape_cast %67 : vector<8xf32> to vector<8x1xf32>
    %69 = vector.broadcast %68 : vector<8x1xf32> to vector<8x8xf32>
    %70 = arith.subf %66, %69 : vector<8x8xf32>
    %71 = math.exp %70 : vector<8x8xf32>
    %cst_33 = arith.constant dense<0.000000e+00> : vector<8xf32>
    %72 = vector.multi_reduction <add>, %71, %cst_33 [1] : vector<8x8xf32> to vector<8xf32>
    %73 = vector.shape_cast %72 : vector<8xf32> to vector<8x1xf32>
    %74 = tpu.reciprocal %73 : vector<8x1xf32> -> vector<8x1xf32>
    %75 = vector.broadcast %74 : vector<8x1xf32> to vector<8x8xf32>
    %76 = arith.mulf %71, %75 : vector<8x8xf32>
    %cst_34 = arith.constant dense<0.000000e+00> : vector<8x8xf32>
    %77 = tpu.matmul %76, %61, %cst_34 {dimension_numbers = #tpu.dot_dimension_numbers<[1], [0], [0], [1], [0, 0, 1, 1], [], []>} : vector<8x8xf32>, vector<8x8xf32>, vector<8x8xf32> -> vector<8x8xf32>
    %78 = vector.extract_strided_slice %35 {offsets = [8, 0], sizes = [8, 32], strides = [1, 1]} : vector<32x32xf32> to vector<8x32xf32>
    %cst_35 = arith.constant dense<0.000000e+00> : vector<8x32xf32>
    %79 = tpu.matmul %77, %78, %cst_35 {dimension_numbers = #tpu.dot_dimension_numbers<[1], [0], [0], [1], [0, 0, 1, 1], [], []>} : vector<8x8xf32>, vector<8x32xf32>, vector<8x32xf32> -> vector<8x32xf32>
    %80 = arith.addf %58, %79 : vector<8x32xf32>
    %81 = vector.extract_strided_slice %27 {offsets = [0, 16], sizes = [8, 8], strides = [1, 1]} : vector<8x32xf32> to vector<8x8xf32>
    %82 = vector.extract_strided_slice %29 {offsets = [0, 16], sizes = [8, 8], strides = [1, 1]} : vector<8x32xf32> to vector<8x8xf32>
    %83 = vector.extract_strided_slice %31 {offsets = [0, 16], sizes = [8, 8], strides = [1, 1]} : vector<8x32xf32> to vector<8x8xf32>
    %cst_36 = arith.constant dense<0.000000e+00> : vector<8x8xf32>
    %84 = tpu.matmul %81, %82, %cst_36 {dimension_numbers = #tpu.dot_dimension_numbers<[1], [1], [0], [0], [0, 0, 1, 0], [], []>} : vector<8x8xf32>, vector<8x8xf32>, vector<8x8xf32> -> vector<8x8xf32>
    %cst_37 = arith.constant 0.353553385 : f32
    %85 = vector.broadcast %cst_37 : f32 to vector<8x8xf32>
    %86 = arith.mulf %84, %85 : vector<8x8xf32>
    %cst_38 = arith.constant -1.000000e+30 : f32
    %87 = vector.broadcast %cst_38 : f32 to vector<8x8xf32>
    %88 = arith.select %34, %86, %87 : vector<8x8xi1>, vector<8x8xf32>
    %cst_39 = arith.constant dense<0xFF800000> : vector<8xf32>
    %89 = vector.multi_reduction <maximumf>, %88, %cst_39 [1] : vector<8x8xf32> to vector<8xf32>
    %90 = vector.shape_cast %89 : vector<8xf32> to vector<8x1xf32>
    %91 = vector.broadcast %90 : vector<8x1xf32> to vector<8x8xf32>
    %92 = arith.subf %88, %91 : vector<8x8xf32>
    %93 = math.exp %92 : vector<8x8xf32>
    %cst_40 = arith.constant dense<0.000000e+00> : vector<8xf32>
    %94 = vector.multi_reduction <add>, %93, %cst_40 [1] : vector<8x8xf32> to vector<8xf32>
    %95 = vector.shape_cast %94 : vector<8xf32> to vector<8x1xf32>
    %96 = tpu.reciprocal %95 : vector<8x1xf32> -> vector<8x1xf32>
    %97 = vector.broadcast %96 : vector<8x1xf32> to vector<8x8xf32>
    %98 = arith.mulf %93, %97 : vector<8x8xf32>
    %cst_41 = arith.constant dense<0.000000e+00> : vector<8x8xf32>
    %99 = tpu.matmul %98, %83, %cst_41 {dimension_numbers = #tpu.dot_dimension_numbers<[1], [0], [0], [1], [0, 0, 1, 1], [], []>} : vector<8x8xf32>, vector<8x8xf32>, vector<8x8xf32> -> vector<8x8xf32>
    %100 = vector.extract_strided_slice %35 {offsets = [16, 0], sizes = [8, 32], strides = [1, 1]} : vector<32x32xf32> to vector<8x32xf32>
    %cst_42 = arith.constant dense<0.000000e+00> : vector<8x32xf32>
    %101 = tpu.matmul %99, %100, %cst_42 {dimension_numbers = #tpu.dot_dimension_numbers<[1], [0], [0], [1], [0, 0, 1, 1], [], []>} : vector<8x8xf32>, vector<8x32xf32>, vector<8x32xf32> -> vector<8x32xf32>
    %102 = arith.addf %80, %101 : vector<8x32xf32>
    %103 = vector.extract_strided_slice %27 {offsets = [0, 24], sizes = [8, 8], strides = [1, 1]} : vector<8x32xf32> to vector<8x8xf32>
    %104 = vector.extract_strided_slice %29 {offsets = [0, 24], sizes = [8, 8], strides = [1, 1]} : vector<8x32xf32> to vector<8x8xf32>
    %105 = vector.extract_strided_slice %31 {offsets = [0, 24], sizes = [8, 8], strides = [1, 1]} : vector<8x32xf32> to vector<8x8xf32>
    %cst_43 = arith.constant dense<0.000000e+00> : vector<8x8xf32>
    %106 = tpu.matmul %103, %104, %cst_43 {dimension_numbers = #tpu.dot_dimension_numbers<[1], [1], [0], [0], [0, 0, 1, 0], [], []>} : vector<8x8xf32>, vector<8x8xf32>, vector<8x8xf32> -> vector<8x8xf32>
    %cst_44 = arith.constant 0.353553385 : f32
    %107 = vector.broadcast %cst_44 : f32 to vector<8x8xf32>
    %108 = arith.mulf %106, %107 : vector<8x8xf32>
    %cst_45 = arith.constant -1.000000e+30 : f32
    %109 = vector.broadcast %cst_45 : f32 to vector<8x8xf32>
    %110 = arith.select %34, %108, %109 : vector<8x8xi1>, vector<8x8xf32>
    %cst_46 = arith.constant dense<0xFF800000> : vector<8xf32>
    %111 = vector.multi_reduction <maximumf>, %110, %cst_46 [1] : vector<8x8xf32> to vector<8xf32>
    %112 = vector.shape_cast %111 : vector<8xf32> to vector<8x1xf32>
    %113 = vector.broadcast %112 : vector<8x1xf32> to vector<8x8xf32>
    %114 = arith.subf %110, %113 : vector<8x8xf32>
    %115 = math.exp %114 : vector<8x8xf32>
    %cst_47 = arith.constant dense<0.000000e+00> : vector<8xf32>
    %116 = vector.multi_reduction <add>, %115, %cst_47 [1] : vector<8x8xf32> to vector<8xf32>
    %117 = vector.shape_cast %116 : vector<8xf32> to vector<8x1xf32>
    %118 = tpu.reciprocal %117 : vector<8x1xf32> -> vector<8x1xf32>
    %119 = vector.broadcast %118 : vector<8x1xf32> to vector<8x8xf32>
    %120 = arith.mulf %115, %119 : vector<8x8xf32>
    %cst_48 = arith.constant dense<0.000000e+00> : vector<8x8xf32>
    %121 = tpu.matmul %120, %105, %cst_48 {dimension_numbers = #tpu.dot_dimension_numbers<[1], [0], [0], [1], [0, 0, 1, 1], [], []>} : vector<8x8xf32>, vector<8x8xf32>, vector<8x8xf32> -> vector<8x8xf32>
    %122 = vector.extract_strided_slice %35 {offsets = [24, 0], sizes = [8, 32], strides = [1, 1]} : vector<32x32xf32> to vector<8x32xf32>
    %cst_49 = arith.constant dense<0.000000e+00> : vector<8x32xf32>
    %123 = tpu.matmul %121, %122, %cst_49 {dimension_numbers = #tpu.dot_dimension_numbers<[1], [0], [0], [1], [0, 0, 1, 1], [], []>} : vector<8x8xf32>, vector<8x32xf32>, vector<8x32xf32> -> vector<8x32xf32>
    %124 = arith.addf %102, %123 : vector<8x32xf32>
    %125 = arith.addf %1, %124 : vector<8x32xf32>
    %c0_50 = arith.constant 0 : index
    %c0_51 = arith.constant 0 : index
    %126 = vector.load %arg8[%c0_50, %c0_51] : memref<1x32xf32, #tpu.memory_space<vmem>>, vector<1x32xf32>
    %127 = vector.broadcast %126 : vector<1x32xf32> to vector<8x32xf32>
    %128 = arith.addf %125, %127 : vector<8x32xf32>
    %c0_52 = arith.constant 0 : index
    %c0_53 = arith.constant 0 : index
    %c0_54 = arith.constant 0 : index
    %129 = vector.load %arg9[%c0_52, %c0_53, %c0_54] : memref<1x8x32xf32, #tpu.memory_space<vmem>>, vector<1x8x32xf32>
    %130 = vector.shape_cast %129 : vector<1x8x32xf32> to vector<8x32xf32>
    %131 = vector.shape_cast %128 : vector<8x32xf32> to vector<1x8x32xf32>
    tpu.vector_store %arg9[%c0_52, %c0_53, %c0_54], %131 {strides = array<i32>} : memref<1x8x32xf32, #tpu.memory_space<vmem>>, vector<1x8x32xf32>,
    return
  }
  func.func @transform_0(%arg0: i32) -> (i32, i32, i32) {
    %c0_i32 = arith.constant 0 : i32
    %c0_i32_0 = arith.constant 0 : i32
    %c0_i32_1 = arith.constant 0 : i32
    return %arg0, %c0_i32, %c0_i32_0 : i32, i32, i32
  }
  func.func @transform_1(%arg0: i32) -> (i32, i32) {
    %c0_i32 = arith.constant 0 : i32
    %c0_i32_0 = arith.constant 0 : i32
    %c0_i32_1 = arith.constant 0 : i32
    return %c0_i32, %c0_i32_0 : i32, i32
  }
  func.func @transform_2(%arg0: i32) -> (i32, i32) {
    %c0_i32 = arith.constant 0 : i32
    %c0_i32_0 = arith.constant 0 : i32
    %c0_i32_1 = arith.constant 0 : i32
    return %c0_i32, %c0_i32_0 : i32, i32
  }
  func.func @transform_3(%arg0: i32) -> (i32, i32) {
    %c0_i32 = arith.constant 0 : i32
    %c0_i32_0 = arith.constant 0 : i32
    %c0_i32_1 = arith.constant 0 : i32
    return %c0_i32, %c0_i32_0 : i32, i32
  }
  func.func @transform_4(%arg0: i32) -> (i32, i32) {
    %c0_i32 = arith.constant 0 : i32
    %c0_i32_0 = arith.constant 0 : i32
    %c0_i32_1 = arith.constant 0 : i32
    return %c0_i32, %c0_i32_0 : i32, i32
  }
  func.func @transform_5(%arg0: i32) -> (i32, i32) {
    %c0_i32 = arith.constant 0 : i32
    %c0_i32_0 = arith.constant 0 : i32
    %c0_i32_1 = arith.constant 0 : i32
    return %c0_i32, %c0_i32_0 : i32, i32
  }
  func.func @transform_6(%arg0: i32) -> (i32, i32) {
    %c0_i32 = arith.constant 0 : i32
    %c0_i32_0 = arith.constant 0 : i32
    %c0_i32_1 = arith.constant 0 : i32
    return %c0_i32, %c0_i32_0 : i32, i32
  }
  func.func @transform_7(%arg0: i32) -> (i32, i32) {
    %c0_i32 = arith.constant 0 : i32
    %c0_i32_0 = arith.constant 0 : i32
    %c0_i32_1 = arith.constant 0 : i32
    return %c0_i32, %c0_i32_0 : i32, i32
  }
  func.func @transform_8(%arg0: i32) -> (i32, i32, i32) {
    %c0_i32 = arith.constant 0 : i32
    %c0_i32_0 = arith.constant 0 : i32
    %c0_i32_1 = arith.constant 0 : i32
    return %arg0, %c0_i32, %c0_i32_0 : i32, i32, i32
  }
}

</mosaic_0001>

<llo_original>
// kernel: tpu_custom_call.1
$region0: #{tpu_custom_call.1}
  #allocation0 [shape = 'u32[]', space=smem, size = 0x4, offset = 0x4, fixed_abs, tag = 'smem constant byte address 0x4 - core index']
  #allocation1 [shape = 'u32[144,128]{1,0:T(1,128)}', space=vmem, size = 0x12000, scoped, tag = 'internal scratch']
  %s0 = inlined_call_operand.hbm [shape: f32[2,8,32], index: 0, kind: input, shape index: {}]
  %s1 = inlined_call_operand.vmem [shape: f32[1,32], index: 1, kind: input, shape index: {}]
  %s2 = inlined_call_operand.vmem [shape: f32[1,32], index: 2, kind: input, shape index: {}]
  %s3 = inlined_call_operand.hbm [shape: f32[32,32], index: 3, kind: input, shape index: {}]
  %s4 = inlined_call_operand.hbm [shape: f32[32,32], index: 4, kind: input, shape index: {}]
  %s5 = inlined_call_operand.hbm [shape: f32[32,32], index: 5, kind: input, shape index: {}]
  %s6 = inlined_call_operand.hbm [shape: f32[32,32], index: 6, kind: input, shape index: {}]
  %s7 = inlined_call_operand.vmem [shape: f32[1,32], index: 7, kind: input, shape index: {}]
  %s8 = inlined_call_operand.hbm [shape: f32[2,8,32], index: 8, kind: output, shape index: {}]
  %s9 = sld [smem:[#allocation0]]
  $region85: #{tpu_custom_call.1} parent=0
    _
  %s11 = ssub.s32 1, %s9
  %s12 = scalar_select 0, %s11, %s9
  $region1: #{tpu_custom_call.1} parent=0
    #allocation2 [shape = 'u8[8192]{0}', space=vmem, size = 0x2000, scoped, tag = 'input window, operand 0']
    #allocation3 [shape = 's32[2]{0}', space=sflag, size = 0x8, scoped, tag = 'scoped memory for tpu_custom_call.1']
    #allocation4 [shape = 's32[2]{0}', space=sflag, size = 0x8, scoped, tag = 'scoped memory for tpu_custom_call.1']
    #allocation5 [shape = 'u8[16384]{0}', space=vmem, size = 0x4000, scoped, tag = 'input window, operand 3, single buffered']
    #allocation6 [shape = 's32[1]{0}', space=sflag, size = 0x4, scoped, tag = 'scoped memory for tpu_custom_call.1']
    #allocation7 [shape = 'u8[16384]{0}', space=vmem, size = 0x4000, scoped, tag = 'input window, operand 4, single buffered']
    #allocation8 [shape = 'u8[16384]{0}', space=vmem, size = 0x4000, scoped, tag = 'input window, operand 5, single buffered']
    #allocation9 [shape = 's32[1]{0}', space=sflag, size = 0x4, scoped, tag = 'scoped memory for tpu_custom_call.1']
    #allocation10 [shape = 'u8[16384]{0}', space=vmem, size = 0x4000, scoped, tag = 'input window, operand 6, single buffered']
    #allocation11 [shape = 'u8[8192]{0}', space=vmem, size = 0x2000, scoped, tag = 'output window, operand 0']
    %13 = vsyncpa [#allocation3], 0
    %s14 = scalar_lea.sflag [#allocation3], 1
    %15 = vsyncpa %s14, 0
    %16 = vsyncpa [#allocation6], 0
    %17 = vsyncpa [#allocation9], 0
    %18 = vsyncpa [#allocation4], 0
    %s19 = scalar_lea.sflag [#allocation4], 1
    %20 = vsyncpa %s19, 0
    loop: start=0, step=1, limit=4
    $region2: #{tpu_custom_call.1} parent=1 // loop_pre_header
      _
    $region3: #{tpu_custom_call.1} parent=1 // loop_header
      %s22 = sphi 0, %s26
      %p23 = scmp.ge.s32.totalorder %s22, 4
      %s32 = sphi 0, %s34
      %s35 = sphi 0, %s32
      %s36 = sphi 0, %s35
      %s52 = sphi 0, %s36
      %s56 = sphi 0, %s56
      %s58 = sphi 0, %s56
      %s59 = sphi 0, %s58
      %s73 = sphi 0, %s59
      %s77 = sphi 0, %s77
      %s79 = sphi 0, %s77
      %s80 = sphi 0, %s79
      %s94 = sphi 0, %s80
      %s98 = sphi 0, %s98
      %s100 = sphi 0, %s98
      %s101 = sphi 0, %s100
      %s115 = sphi 0, %s101
      %s119 = sphi 0, %s119
      %s121 = sphi 0, %s119
      %s122 = sphi 0, %s121
      %s136 = sphi 0, %s122
      %s140 = sphi 0, %s140
      %s142 = sphi 0, %s140
      %s143 = sphi 0, %s142
      %s157 = sphi 0, %s143
      %s161 = sphi 0, %s161
      %s163 = sphi 0, %s161
      %s164 = sphi 0, %s163
      %s178 = sphi 0, %s164
      %s182 = sphi 0, %s182
      %s184 = sphi 0, %s182
      %s185 = sphi 0, %s184
      %s199 = sphi 0, %s185
      %s205 = sphi 0, %s207
      %s208 = sphi 0, %s205
      %s209 = sphi 0, %s208
      %s225 = sphi 0, %s209
    $region4: #{tpu_custom_call.1} parent=1 // loop_header_branch
      %25 = sbr.rel (%p23) target = $region8
    $region5: #{tpu_custom_call.1} parent=1 // loop_body
      %s27 = ssub.s32 %s22, 1
      %s28 = ssub.s32 %s22, 2
      %s29 = sadd.s32 %s22, 1
      %s30 = ssub.s32 %s22, %s29
      %p31 = scmp.eq.s32.totalorder %s30, 0
      %s33 = sadd.s32 %s32, 1
      %s34 = scalar_select %p31, %s32, %s33
      %p37 = pneg %p31
      %p38 = scmp.eq.s32.totalorder %s22, 1
      %p39 = por %p37, %p38
      %p40 = scmp.ne.s32.totalorder %s32, %s35
      %p41 = scmp.eq.s32.totalorder %s22, 0
      %p42 = por %p40, %p41
      %p43 = scmp.ne.s32.totalorder %s32, %s35
      %p44 = scmp.eq.s32.totalorder %s27, 1
      %p45 = por %p43, %p44
      %p46 = scmp.ne.s32.totalorder %s35, %s36
      %p47 = scmp.eq.s32.totalorder %s27, 0
      %p48 = por %p46, %p47
      %p49 = scmp.ne.s32.totalorder %s35, %s36
      %p50 = scmp.eq.s32.totalorder %s28, 1
      %p51 = por %p49, %p50
      %p53 = scmp.ne.s32.totalorder %s36, %s52
      %p54 = scmp.eq.s32.totalorder %s28, 0
      %p55 = por %p53, %p54
      %s57 = sadd.s32 %s56, 1
      %p60 = scmp.eq.s32.totalorder %s22, 1
      %p61 = scmp.ne.s32.totalorder %s56, %s58
      %p62 = scmp.eq.s32.totalorder %s22, 0
      %p63 = por %p61, %p62
      %p64 = scmp.ne.s32.totalorder %s56, %s58
      %p65 = scmp.eq.s32.totalorder %s27, 1
      %p66 = por %p64, %p65
      %p67 = scmp.ne.s32.totalorder %s58, %s59
      %p68 = scmp.eq.s32.totalorder %s27, 0
      %p69 = por %p67, %p68
      %p70 = scmp.ne.s32.totalorder %s58, %s59
      %p71 = scmp.eq.s32.totalorder %s28, 1
      %p72 = por %p70, %p71
      %p74 = scmp.ne.s32.totalorder %s59, %s73
      %p75 = scmp.eq.s32.totalorder %s28, 0
      %p76 = por %p74, %p75
      %s78 = sadd.s32 %s77, 1
      %p81 = scmp.eq.s32.totalorder %s22, 1
      %p82 = scmp.ne.s32.totalorder %s77, %s79
      %p83 = scmp.eq.s32.totalorder %s22, 0
      %p84 = por %p82, %p83
      %p85 = scmp.ne.s32.totalorder %s77, %s79
      %p86 = scmp.eq.s32.totalorder %s27, 1
      %p87 = por %p85, %p86
      %p88 = scmp.ne.s32.totalorder %s79, %s80
      %p89 = scmp.eq.s32.totalorder %s27, 0
      %p90 = por %p88, %p89
      %p91 = scmp.ne.s32.totalorder %s79, %s80
      %p92 = scmp.eq.s32.totalorder %s28, 1
      %p93 = por %p91, %p92
      %p95 = scmp.ne.s32.totalorder %s80, %s94
      %p96 = scmp.eq.s32.totalorder %s28, 0
      %p97 = por %p95, %p96
      %s99 = sadd.s32 %s98, 1
      %p102 = scmp.eq.s32.totalorder %s22, 1
      %p103 = scmp.ne.s32.totalorder %s98, %s100
      %p104 = scmp.eq.s32.totalorder %s22, 0
      %p105 = por %p103, %p104
      %p106 = scmp.ne.s32.totalorder %s98, %s100
      %p107 = scmp.eq.s32.totalorder %s27, 1
      %p108 = por %p106, %p107
      %p109 = scmp.ne.s32.totalorder %s100, %s101
      %p110 = scmp.eq.s32.totalorder %s27, 0
      %p111 = por %p109, %p110
      %p112 = scmp.ne.s32.totalorder %s100, %s101
      %p113 = scmp.eq.s32.totalorder %s28, 1
      %p114 = por %p112, %p113
      %p116 = scmp.ne.s32.totalorder %s101, %s115
      %p117 = scmp.eq.s32.totalorder %s28, 0
      %p118 = por %p116, %p117
      %s120 = sadd.s32 %s119, 1
      %p123 = scmp.eq.s32.totalorder %s22, 1
      %p124 = scmp.ne.s32.totalorder %s119, %s121
      %p125 = scmp.eq.s32.totalorder %s22, 0
      %p126 = por %p124, %p125
      %p127 = scmp.ne.s32.totalorder %s119, %s121
      %p128 = scmp.eq.s32.totalorder %s27, 1
      %p129 = por %p127, %p128
      %p130 = scmp.ne.s32.totalorder %s121, %s122
      %p131 = scmp.eq.s32.totalorder %s27, 0
      %p132 = por %p130, %p131
      %p133 = scmp.ne.s32.totalorder %s121, %s122
      %p134 = scmp.eq.s32.totalorder %s28, 1
      %p135 = por %p133, %p134
      %p137 = scmp.ne.s32.totalorder %s122, %s136
      %p138 = scmp.eq.s32.totalorder %s28, 0
      %p139 = por %p137, %p138
      %s141 = sadd.s32 %s140, 1
      %p144 = scmp.eq.s32.totalorder %s22, 1
      %p145 = scmp.ne.s32.totalorder %s140, %s142
      %p146 = scmp.eq.s32.totalorder %s22, 0
      %p147 = por %p145, %p146
      %p148 = scmp.ne.s32.totalorder %s140, %s142
      %p149 = scmp.eq.s32.totalorder %s27, 1
      %p150 = por %p148, %p149
      %p151 = scmp.ne.s32.totalorder %s142, %s143
      %p152 = scmp.eq.s32.totalorder %s27, 0
      %p153 = por %p151, %p152
      %p154 = scmp.ne.s32.totalorder %s142, %s143
      %p155 = scmp.eq.s32.totalorder %s28, 1
      %p156 = por %p154, %p155
      %p158 = scmp.ne.s32.totalorder %s143, %s157
      %p159 = scmp.eq.s32.totalorder %s28, 0
      %p160 = por %p158, %p159
      %s162 = sadd.s32 %s161, 1
      %p165 = scmp.eq.s32.totalorder %s22, 1
      %p166 = scmp.ne.s32.totalorder %s161, %s163
      %p167 = scmp.eq.s32.totalorder %s22, 0
      %p168 = por %p166, %p167
      %p169 = scmp.ne.s32.totalorder %s161, %s163
      %p170 = scmp.eq.s32.totalorder %s27, 1
      %p171 = por %p169, %p170
      %p172 = scmp.ne.s32.totalorder %s163, %s164
      %p173 = scmp.eq.s32.totalorder %s27, 0
      %p174 = por %p172, %p173
      %p175 = scmp.ne.s32.totalorder %s163, %s164
      %p176 = scmp.eq.s32.totalorder %s28, 1
      %p177 = por %p175, %p176
      %p179 = scmp.ne.s32.totalorder %s164, %s178
      %p180 = scmp.eq.s32.totalorder %s28, 0
      %p181 = por %p179, %p180
      %s183 = sadd.s32 %s182, 1
      %p186 = scmp.eq.s32.totalorder %s22, 1
      %p187 = scmp.ne.s32.totalorder %s182, %s184
      %p188 = scmp.eq.s32.totalorder %s22, 0
      %p189 = por %p187, %p188
      %p190 = scmp.ne.s32.totalorder %s182, %s184
      %p191 = scmp.eq.s32.totalorder %s27, 1
      %p192 = por %p190, %p191
      %p193 = scmp.ne.s32.totalorder %s184, %s185
      %p194 = scmp.eq.s32.totalorder %s27, 0
      %p195 = por %p193, %p194
      %p196 = scmp.ne.s32.totalorder %s184, %s185
      %p197 = scmp.eq.s32.totalorder %s28, 1
      %p198 = por %p196, %p197
      %p200 = scmp.ne.s32.totalorder %s185, %s199
      %p201 = scmp.eq.s32.totalorder %s28, 0
      %p202 = por %p200, %p201
      %s203 = ssub.s32 %s22, %s29
      %p204 = scmp.eq.s32.totalorder %s203, 0
      %s206 = sadd.s32 %s205, 1
      %s207 = scalar_select %p204, %s205, %s206
      %p210 = pneg %p204
      %p211 = scmp.eq.s32.totalorder %s22, 1
      %p212 = por %p210, %p211
      %p213 = scmp.ne.s32.totalorder %s205, %s208
      %p214 = scmp.eq.s32.totalorder %s22, 0
      %p215 = por %p213, %p214
      %p216 = scmp.ne.s32.totalorder %s205, %s208
      %p217 = scmp.eq.s32.totalorder %s27, 1
      %p218 = por %p216, %p217
      %p219 = scmp.ne.s32.totalorder %s208, %s209
      %p220 = scmp.eq.s32.totalorder %s27, 0
      %p221 = por %p219, %p220
      %p222 = scmp.ne.s32.totalorder %s208, %s209
      %p223 = scmp.eq.s32.totalorder %s28, 1
      %p224 = por %p222, %p223
      %p226 = scmp.ne.s32.totalorder %s209, %s225
      %p227 = scmp.eq.s32.totalorder %s28, 0
      %p228 = por %p226, %p227
      %p229 = scmp.le.s32.totalorder 1, %s22
      %p230 = scmp.lt.s32.totalorder %s22, 3
      %p231 = pnand %p229, %p230
      %p232 = pneg %p231
      // Predicated region
      $region9: #{tpu_custom_call.1} parent=5 // pred_check
        _
      $region10: #{tpu_custom_call.1} parent=5 // pred_check_branch
        %234 = sbr.rel (%p231) target = $region12
      $region11: #{tpu_custom_call.1} parent=5 // pred_region
        %s235 = ssub.s32 %s22, 1
        // Predicated region
        $region13: #{tpu_custom_call.1} parent=11 // pred_check
          %p236 = pneg %p69
        $region14: #{tpu_custom_call.1} parent=11 // pred_check_branch
          %238 = sbr.rel (%p236) target = $region16
        $region15: #{tpu_custom_call.1} parent=11 // pred_region
          _
        $region16: #{tpu_custom_call.1} parent=11 // pred_fallthru
          _
        // Predicated region
        $region17: #{tpu_custom_call.1} parent=11 // pred_check
          %p239 = pneg %p90
        $region18: #{tpu_custom_call.1} parent=11 // pred_check_branch
          %241 = sbr.rel (%p239) target = $region20
        $region19: #{tpu_custom_call.1} parent=11 // pred_region
          _
        $region20: #{tpu_custom_call.1} parent=11 // pred_fallthru
          _
        // Predicated region
        $region21: #{tpu_custom_call.1} parent=11 // pred_check
          %p242 = pneg %p111
        $region22: #{tpu_custom_call.1} parent=11 // pred_check_branch
          %244 = sbr.rel (%p242) target = $region24
        $region23: #{tpu_custom_call.1} parent=11 // pred_region
          %s246 = ssub.s32 512, 512
          %247 = vsyncadd [#allocation6], %s246
          %s248 = sshll.u32 [#allocation5], 4
          %s249 = int_to_ptr.vmem [resolvable:$true] %s248
          %254 = dma.hbm_to_vmem [thread:$0]  %s3, 512, %s249, [#allocation6], 128, 128, 8
        $region24: #{tpu_custom_call.1} parent=11 // pred_fallthru
          _
        // Predicated region
        $region25: #{tpu_custom_call.1} parent=11 // pred_check
          %p255 = pneg %p132
        $region26: #{tpu_custom_call.1} parent=11 // pred_check_branch
          %257 = sbr.rel (%p255) target = $region28
        $region27: #{tpu_custom_call.1} parent=11 // pred_region
          %s259 = ssub.s32 512, 512
          %260 = vsyncadd [#allocation6], %s259
          %s261 = sshll.u32 [#allocation7], 4
          %s262 = int_to_ptr.vmem [resolvable:$true] %s261
          %267 = dma.hbm_to_vmem [thread:$0]  %s4, 512, %s262, [#allocation6], 128, 128, 8
        $region28: #{tpu_custom_call.1} parent=11 // pred_fallthru
          _
        // Predicated region
        $region29: #{tpu_custom_call.1} parent=11 // pred_check
          %p268 = pneg %p153
        $region30: #{tpu_custom_call.1} parent=11 // pred_check_branch
          %270 = sbr.rel (%p268) target = $region32
        $region31: #{tpu_custom_call.1} parent=11 // pred_region
          %s272 = ssub.s32 512, 512
          %273 = vsyncadd [#allocation9], %s272
          %s274 = sshll.u32 [#allocation8], 4
          %s275 = int_to_ptr.vmem [resolvable:$true] %s274
          %280 = dma.hbm_to_vmem [thread:$0]  %s5, 512, %s275, [#allocation9], 128, 128, 8
        $region32: #{tpu_custom_call.1} parent=11 // pred_fallthru
          _
        // Predicated region
        $region33: #{tpu_custom_call.1} parent=11 // pred_check
          %p281 = pneg %p174
        $region34: #{tpu_custom_call.1} parent=11 // pred_check_branch
          %283 = sbr.rel (%p281) target = $region36
        $region35: #{tpu_custom_call.1} parent=11 // pred_region
          %s285 = ssub.s32 512, 512
          %286 = vsyncadd [#allocation9], %s285
          %s287 = sshll.u32 [#allocation10], 4
          %s288 = int_to_ptr.vmem [resolvable:$true] %s287
          %293 = dma.hbm_to_vmem [thread:$0]  %s6, 512, %s288, [#allocation9], 128, 128, 8
        $region36: #{tpu_custom_call.1} parent=11 // pred_fallthru
          _
        // Predicated region
        $region37: #{tpu_custom_call.1} parent=11 // pred_check
          %p294 = pneg %p195
        $region38: #{tpu_custom_call.1} parent=11 // pred_check_branch
          %296 = sbr.rel (%p294) target = $region40
        $region39: #{tpu_custom_call.1} parent=11 // pred_region
          _
        $region40: #{tpu_custom_call.1} parent=11 // pred_fallthru
          _
      $region12: #{tpu_custom_call.1} parent=5 // pred_fallthru
        _
      %p297 = scmp.lt.s32.totalorder %s22, 2
      // Predicated region
      $region41: #{tpu_custom_call.1} parent=5 // pred_check
        %p298 = pneg %p297
      $region42: #{tpu_custom_call.1} parent=5 // pred_check_branch
        %300 = sbr.rel (%p298) target = $region44
      $region43: #{tpu_custom_call.1} parent=5 // pred_region
        // Predicated region
        $region45: #{tpu_custom_call.1} parent=43 // pred_check
          %p301 = pneg %p42
        $region46: #{tpu_custom_call.1} parent=43 // pred_check_branch
          %303 = sbr.rel (%p301) target = $region48
        $region47: #{tpu_custom_call.1} parent=43 // pred_region
          %s304 = sand.u32 %s32, 1
          %s305 = scalar_lea.sflag [#allocation3], %s304
          %s306 = sand.u32 %s32, 1
          %s307 = smul.addr %s306, 8
          %s308 = scalar_lea.vmem [#allocation2], %s307
          %s310 = ssub.s32 128, 128
          %311 = vsyncadd %s305, %s310
          %s312 = smul.addr %s22, 128
          %s313 = scalar_lea.hbm %s0, %s312
          %s315 = sshll.u32 %s308, 4
          %s316 = int_to_ptr.vmem [resolvable:$true] %s315
          %318 = dma.hbm_to_vmem [thread:$0]  %s313, 128, %s316, %s305
        $region48: #{tpu_custom_call.1} parent=43 // pred_fallthru
          _
      $region44: #{tpu_custom_call.1} parent=5 // pred_fallthru
        _
      %p319 = scmp.le.s32.totalorder 1, %s22
      %p320 = scmp.lt.s32.totalorder %s22, 3
      %p321 = pnand %p319, %p320
      %p322 = pneg %p321
      // Predicated region
      $region49: #{tpu_custom_call.1} parent=5 // pred_check
        _
      $region50: #{tpu_custom_call.1} parent=5 // pred_check_branch
        %324 = sbr.rel (%p321) target = $region52
      $region51: #{tpu_custom_call.1} parent=5 // pred_region
        %s325 = ssub.s32 %s22, 1
        %s326 = sand.u32 %s35, 1
        %s327 = scalar_lea.sflag [#allocation3], %s326
        %s328 = sand.u32 %s35, 1
        %s329 = smul.addr %s328, 8
        %s330 = scalar_lea.vmem [#allocation2], %s329
        // Predicated region
        $region53: #{tpu_custom_call.1} parent=51 // pred_check
          %p331 = pneg %p48
        $region54: #{tpu_custom_call.1} parent=51 // pred_check_branch
          %333 = sbr.rel (%p331) target = $region56
        $region55: #{tpu_custom_call.1} parent=51 // pred_region
          %334 = dma.done %s327, 128
        $region56: #{tpu_custom_call.1} parent=51 // pred_fallthru
          _
        // Predicated region
        $region57: #{tpu_custom_call.1} parent=51 // pred_check
          %p335 = pneg %p111
        $region58: #{tpu_custom_call.1} parent=51 // pred_check_branch
          %337 = sbr.rel (%p335) target = $region60
        $region59: #{tpu_custom_call.1} parent=51 // pred_region
          %338 = dma.done [#allocation6], 512
        $region60: #{tpu_custom_call.1} parent=51 // pred_fallthru
          _
        // Predicated region
        $region61: #{tpu_custom_call.1} parent=51 // pred_check
          %p339 = pneg %p132
        $region62: #{tpu_custom_call.1} parent=51 // pred_check_branch
          %341 = sbr.rel (%p339) target = $region64
        $region63: #{tpu_custom_call.1} parent=51 // pred_region
          %342 = dma.done [#allocation6], 512
        $region64: #{tpu_custom_call.1} parent=51 // pred_fallthru
          _
        // Predicated region
        $region65: #{tpu_custom_call.1} parent=51 // pred_check
          %p343 = pneg %p153
        $region66: #{tpu_custom_call.1} parent=51 // pred_check_branch
          %345 = sbr.rel (%p343) target = $region68
        $region67: #{tpu_custom_call.1} parent=51 // pred_region
          %346 = dma.done [#allocation9], 512
        $region68: #{tpu_custom_call.1} parent=51 // pred_fallthru
          _
        // Predicated region
        $region69: #{tpu_custom_call.1} parent=51 // pred_check
          %p347 = pneg %p174
        $region70: #{tpu_custom_call.1} parent=51 // pred_check_branch
          %349 = sbr.rel (%p347) target = $region72
        $region71: #{tpu_custom_call.1} parent=51 // pred_region
          %350 = dma.done [#allocation9], 512
        $region72: #{tpu_custom_call.1} parent=51 // pred_fallthru
          _
        %s351 = sand.u32 %s35, 1
        %s352 = scalar_lea.sflag [#allocation3], %s351
        %s353 = sand.u32 %s35, 1
        %s354 = smul.addr %s353, 8
        %s355 = scalar_lea.vmem [#allocation2], %s354
        %p356 = pneg %p48
        %p357 = pneg %p45
        %p358 = pneg %p69
        %p359 = pneg %p66
        %p360 = pneg %p90
        %p361 = pneg %p87
        %p362 = pneg %p111
        %p363 = pneg %p108
        %p364 = pneg %p132
        %p365 = pneg %p129
        %p366 = pneg %p153
        %p367 = pneg %p150
        %p368 = pneg %p174
        %p369 = pneg %p171
        %p370 = pneg %p195
        %p371 = pneg %p192
        %p372 = pneg %p221
        %p373 = pneg %p218
        %s374 = sand.u32 %s208, 1
        %s375 = scalar_lea.sflag [#allocation4], %s374
        %s376 = sand.u32 %s208, 1
        %s377 = smul.addr %s376, 8
        %s378 = scalar_lea.vmem [#allocation11], %s377
        %v379 = vld [vmem:[%s330] sm:$0xff]
        %v380 = vld [vmem:[%s1] sm:$0x1]
        %v381 = vld [vmem:[%s2] sm:$0x1]
        %vm382 = vcmask 261120
        %v383 = vsel %vm382, %v379, 0.0
        %384 = vadd.xlane.f32.xlu0 %v383
        %v385 = vpop.xlane.xlu0 %384
        %v386 = vrcp.pop 32.0
        %v387 = vmul.f32 %v385, %v386
        %v388 = vsub.f32 %v379, %v387
        %v389 = vmul.f32 %v388, %v388
        %v390 = vsel %vm382, %v389, 0.0
        %391 = vadd.xlane.f32.xlu0 %v390
        %v392 = vpop.xlane.xlu0 %391
        %v393 = vmul.f32 %v392, %v386
        %v394 = vadd.f32 %v393, 1e-05
        %v395 = vrsqrt.pop %v394
        %v396 = vmul.f32 %v388, %v395
        %v398 = vlaneseq
        %v399 = vshrl.u32 %v398, 7
        %v400 = vsub.s32 0, %v399
        %v401 = vrot.slane %v380, %v400
        %v403 = vmul.f32 %v396, %v401
        %v405 = vlaneseq
        %v406 = vshrl.u32 %v405, 7
        %v407 = vsub.s32 0, %v406
        %v408 = vrot.slane %v381, %v407
        %v410 = vadd.f32 %v403, %v408
        %v411 = vld [vmem:[#allocation5] sm:$0xff]
        %v412 = vld [vmem:[#allocation5 + $0x8] sm:$0xff]
        %v413 = vld [vmem:[#allocation5 + $0x10] sm:$0xff]
        %v414 = vld [vmem:[#allocation5 + $0x18] sm:$0xff]
        %v416 = vsel %vm382, %v410, 0
        %418 = vmatprep.subr.mxu0 0.0
        %419 = vmatpush1.msra.mxu0 %v411
        %420 = vmatprep.subr.mxu0 0.0
        %421 = vmatpush1.msra.mxu0 %v412
        %422 = vmatprep.subr.mxu0 0.0
        %423 = vmatpush1.msra.mxu0 %v413
        %424 = vmatprep.subr.mxu0 0.0
        %425 = vmatpush1.msra.mxu0 %v414
        %426 = vmatprep.subr.mxu0 0.0
        %427 = vmatpush1.msra.mxu0 0.0
        %428 = vmatprep.subr.mxu0 0.0
        %429 = vmatpush1.msra.mxu0 0.0
        %430 = vmatprep.subr.mxu0 0.0
        %431 = vmatpush1.msra.mxu0 0.0
        %432 = vmatprep.subr.mxu0 0.0
        %433 = vmatpush1.msra.mxu0 0.0
        %434 = vmatprep.subr.mxu0 0.0
        %435 = vmatpush1.msra.mxu0 0.0
        %436 = vmatprep.subr.mxu0 0.0
        %437 = vmatpush1.msra.mxu0 0.0
        %438 = vmatprep.subr.mxu0 0.0
        %439 = vmatpush1.msra.mxu0 0.0
        %440 = vmatprep.subr.mxu0 0.0
        %441 = vmatpush1.msra.mxu0 0.0
        %442 = vmatprep.subr.mxu0 0.0
        %443 = vmatpush1.msra.mxu0 0.0
        %444 = vmatprep.subr.mxu0 0.0
        %445 = vmatpush1.msra.mxu0 0.0
        %446 = vmatprep.subr.mxu0 0.0
        %447 = vmatpush1.msra.mxu0 0.0
        %448 = vmatprep.subr.mxu0 0.0
        %449 = vmatpush1.msra.mxu0 0.0
        %450 = vmatprep.subr.mxu0 0.0
        %451 = vmatpush1.msra.mxu0 0.0
        %452 = vmatprep.subr.mxu0 0.0
        %453 = vmatpush1.msra.mxu0 0.0
        %454 = vmatprep.subr.mxu0 0.0
        %455 = vmatpush1.msra.mxu0 0.0
        %456 = vmatprep.subr.mxu0 0.0
        %457 = vmatpush1.msra.mxu0 0.0
        %458 = vmatprep.subr.mxu0 0.0
        %459 = vmatpush1.msra.mxu0 0.0
        %460 = vmatprep.subr.mxu0 0.0
        %461 = vmatpush1.msra.mxu0 0.0
        %462 = vmatprep.subr.mxu0 0.0
        %463 = vmatpush1.msra.mxu0 0.0
        %464 = vmatprep.subr.mxu0 0.0
        %465 = vmatpush1.msra.mxu0 0.0
        %466 = vmatprep.subr.mxu0 0.0
        %467 = vmatpush1.msra.mxu0 0.0
        %468 = vmatprep.subr.mxu0 0.0
        %469 = vmatpush1.msra.mxu0 0.0
        %470 = vmatprep.subr.mxu0 0.0
        %471 = vmatpush1.msra.mxu0 0.0
        %472 = vmatprep.subr.mxu0 0.0
        %473 = vmatpush1.msra.mxu0 0.0
        %474 = vmatprep.subr.mxu0 0.0
        %475 = vmatpush1.msra.mxu0 0.0
        %476 = vmatprep.subr.mxu0 0.0
        %477 = vmatpush1.msra.mxu0 0.0
        %478 = vmatprep.subr.mxu0 0.0
        %479 = vmatpush1.msra.mxu0 0.0
        %480 = vmatprep.subr.mxu0 0.0
        %481 = vmatpush1.msra.mxu0 0.0
        %482 = vmatprep.mubr.f32.mxu0 0.0
        %483 = vmatmul.mubr.f32.gmra.mrb[0].mxu0 %v416
        %v484 = vpop.f32.mrb[0].mxu0
        %v485 = vadd.f32 0.0, %v484
        %v486 = vpop.f32.mrb[0].mxu0
        %487 = vdwg.mxu0
        %v488 = vld [vmem:[#allocation7] sm:$0xff]
        %v489 = vld [vmem:[#allocation7 + $0x8] sm:$0xff]
        %v490 = vld [vmem:[#allocation7 + $0x10] sm:$0xff]
        %v491 = vld [vmem:[#allocation7 + $0x18] sm:$0xff]
        %492 = vmatprep.subr.mxu0 0.0
        %493 = vmatpush1.msra.mxu0 %v488
        %494 = vmatprep.subr.mxu0 0.0
        %495 = vmatpush1.msra.mxu0 %v489
        %496 = vmatprep.subr.mxu0 0.0
        %497 = vmatpush1.msra.mxu0 %v490
        %498 = vmatprep.subr.mxu0 0.0
        %499 = vmatpush1.msra.mxu0 %v491
        %500 = vmatprep.subr.mxu0 0.0
        %501 = vmatpush1.msra.mxu0 0.0
        %502 = vmatprep.subr.mxu0 0.0
        %503 = vmatpush1.msra.mxu0 0.0
        %504 = vmatprep.subr.mxu0 0.0
        %505 = vmatpush1.msra.mxu0 0.0
        %506 = vmatprep.subr.mxu0 0.0
        %507 = vmatpush1.msra.mxu0 0.0
        %508 = vmatprep.subr.mxu0 0.0
        %509 = vmatpush1.msra.mxu0 0.0
        %510 = vmatprep.subr.mxu0 0.0
        %511 = vmatpush1.msra.mxu0 0.0
        %512 = vmatprep.subr.mxu0 0.0
        %513 = vmatpush1.msra.mxu0 0.0
        %514 = vmatprep.subr.mxu0 0.0
        %515 = vmatpush1.msra.mxu0 0.0
        %516 = vmatprep.subr.mxu0 0.0
        %517 = vmatpush1.msra.mxu0 0.0
        %518 = vmatprep.subr.mxu0 0.0
        %519 = vmatpush1.msra.mxu0 0.0
        %520 = vmatprep.subr.mxu0 0.0
        %521 = vmatpush1.msra.mxu0 0.0
        %522 = vmatprep.subr.mxu0 0.0
        %523 = vmatpush1.msra.mxu0 0.0
        %524 = vmatprep.subr.mxu0 0.0
        %525 = vmatpush1.msra.mxu0 0.0
        %526 = vmatprep.subr.mxu0 0.0
        %527 = vmatpush1.msra.mxu0 0.0
        %528 = vmatprep.subr.mxu0 0.0
        %529 = vmatpush1.msra.mxu0 0.0
        %530 = vmatprep.subr.mxu0 0.0
        %531 = vmatpush1.msra.mxu0 0.0
        %532 = vmatprep.subr.mxu0 0.0
        %533 = vmatpush1.msra.mxu0 0.0
        %534 = vmatprep.subr.mxu0 0.0
        %535 = vmatpush1.msra.mxu0 0.0
        %536 = vmatprep.subr.mxu0 0.0
        %537 = vmatpush1.msra.mxu0 0.0
        %538 = vmatprep.subr.mxu0 0.0
        %539 = vmatpush1.msra.mxu0 0.0
        %540 = vmatprep.subr.mxu0 0.0
        %541 = vmatpush1.msra.mxu0 0.0
        %542 = vmatprep.subr.mxu0 0.0
        %543 = vmatpush1.msra.mxu0 0.0
        %544 = vmatprep.subr.mxu0 0.0
        %545 = vmatpush1.msra.mxu0 0.0
        %546 = vmatprep.subr.mxu0 0.0
        %547 = vmatpush1.msra.mxu0 0.0
        %548 = vmatprep.subr.mxu0 0.0
        %549 = vmatpush1.msra.mxu0 0.0
        %550 = vmatprep.subr.mxu0 0.0
        %551 = vmatpush1.msra.mxu0 0.0
        %552 = vmatprep.subr.mxu0 0.0
        %553 = vmatpush1.msra.mxu0 0.0
        %554 = vmatprep.subr.mxu0 0.0
        %555 = vmatpush1.msra.mxu0 0.0
        %556 = vmatprep.mubr.f32.mxu0 0.0
        %557 = vmatmul.mubr.f32.gmra.mrb[0].mxu0 %v416
        %v558 = vpop.f32.mrb[0].mxu0
        %v559 = vadd.f32 0.0, %v558
        %v560 = vpop.f32.mrb[0].mxu0
        %561 = vdwg.mxu0
        %v562 = vld [vmem:[#allocation8] sm:$0xff]
        %v563 = vld [vmem:[#allocation8 + $0x8] sm:$0xff]
        %v564 = vld [vmem:[#allocation8 + $0x10] sm:$0xff]
        %v565 = vld [vmem:[#allocation8 + $0x18] sm:$0xff]
        %566 = vmatprep.subr.mxu0 0.0
        %567 = vmatpush1.msra.mxu0 %v562
        %568 = vmatprep.subr.mxu0 0.0
        %569 = vmatpush1.msra.mxu0 %v563
        %570 = vmatprep.subr.mxu0 0.0
        %571 = vmatpush1.msra.mxu0 %v564
        %572 = vmatprep.subr.mxu0 0.0
        %573 = vmatpush1.msra.mxu0 %v565
        %574 = vmatprep.subr.mxu0 0.0
        %575 = vmatpush1.msra.mxu0 0.0
        %576 = vmatprep.subr.mxu0 0.0
        %577 = vmatpush1.msra.mxu0 0.0
        %578 = vmatprep.subr.mxu0 0.0
        %579 = vmatpush1.msra.mxu0 0.0
        %580 = vmatprep.subr.mxu0 0.0
        %581 = vmatpush1.msra.mxu0 0.0
        %582 = vmatprep.subr.mxu0 0.0
        %583 = vmatpush1.msra.mxu0 0.0
        %584 = vmatprep.subr.mxu0 0.0
        %585 = vmatpush1.msra.mxu0 0.0
        %586 = vmatprep.subr.mxu0 0.0
        %587 = vmatpush1.msra.mxu0 0.0
        %588 = vmatprep.subr.mxu0 0.0
        %589 = vmatpush1.msra.mxu0 0.0
        %590 = vmatprep.subr.mxu0 0.0
        %591 = vmatpush1.msra.mxu0 0.0
        %592 = vmatprep.subr.mxu0 0.0
        %593 = vmatpush1.msra.mxu0 0.0
        %594 = vmatprep.subr.mxu0 0.0
        %595 = vmatpush1.msra.mxu0 0.0
        %596 = vmatprep.subr.mxu0 0.0
        %597 = vmatpush1.msra.mxu0 0.0
        %598 = vmatprep.subr.mxu0 0.0
        %599 = vmatpush1.msra.mxu0 0.0
        %600 = vmatprep.subr.mxu0 0.0
        %601 = vmatpush1.msra.mxu0 0.0
        %602 = vmatprep.subr.mxu0 0.0
        %603 = vmatpush1.msra.mxu0 0.0
        %604 = vmatprep.subr.mxu0 0.0
        %605 = vmatpush1.msra.mxu0 0.0
        %606 = vmatprep.subr.mxu0 0.0
        %607 = vmatpush1.msra.mxu0 0.0
        %608 = vmatprep.subr.mxu0 0.0
        %609 = vmatpush1.msra.mxu0 0.0
        %610 = vmatprep.subr.mxu0 0.0
        %611 = vmatpush1.msra.mxu0 0.0
        %612 = vmatprep.subr.mxu0 0.0
        %613 = vmatpush1.msra.mxu0 0.0
        %614 = vmatprep.subr.mxu0 0.0
        %615 = vmatpush1.msra.mxu0 0.0
        %616 = vmatprep.subr.mxu0 0.0
        %617 = vmatpush1.msra.mxu0 0.0
        %618 = vmatprep.subr.mxu0 0.0
        %619 = vmatpush1.msra.mxu0 0.0
        %620 = vmatprep.subr.mxu0 0.0
        %621 = vmatpush1.msra.mxu0 0.0
        %622 = vmatprep.subr.mxu0 0.0
        %623 = vmatpush1.msra.mxu0 0.0
        %624 = vmatprep.subr.mxu0 0.0
        %625 = vmatpush1.msra.mxu0 0.0
        %626 = vmatprep.subr.mxu0 0.0
        %627 = vmatpush1.msra.mxu0 0.0
        %628 = vmatprep.subr.mxu0 0.0
        %629 = vmatpush1.msra.mxu0 0.0
        %630 = vmatprep.mubr.f32.mxu0 0.0
        %631 = vmatmul.mubr.f32.gmra.mrb[0].mxu0 %v416
        %v632 = vpop.f32.mrb[0].mxu0
        %v633 = vadd.f32 0.0, %v632
        %v634 = vpop.f32.mrb[0].mxu0
        %635 = vdwg.mxu0
        %v636 = vlaneseq
        %v637 = vshrl.u32 %v636, 7
        %v638 = vlaneseq
        %v639 = vand.u32 %v638, 127
        %vm640 = vcmp.ge.s32.totalorder %v637, %v639
        %v641 = vld [vmem:[#allocation10] sm:$0xff]
        %v642 = vld [vmem:[#allocation10 + $0x8] sm:$0xff]
        %v643 = vld [vmem:[#allocation10 + $0x10] sm:$0xff]
        %v644 = vld [vmem:[#allocation10 + $0x18] sm:$0xff]
        %vm645 = vcmask 64512
        %v647 = vsel %vm645, %v485, 0
        %v650 = vsel %vm645, %v559, 0
        %652 = vmatprep.subr.mxu0 0.0
        %653 = vmatpush1.xpose.msra.mxu0 %v650
        %654 = vmatprep.subr.mxu0 0.0
        %655 = vmatpush1.xpose.msra.mxu0 0.0
        %656 = vmatprep.subr.mxu0 0.0
        %657 = vmatpush1.xpose.msra.mxu0 0.0
        %658 = vmatprep.subr.mxu0 0.0
        %659 = vmatpush1.xpose.msra.mxu0 0.0
        %660 = vmatprep.subr.mxu0 0.0
        %661 = vmatpush1.xpose.msra.mxu0 0.0
        %662 = vmatprep.subr.mxu0 0.0
        %663 = vmatpush1.xpose.msra.mxu0 0.0
        %664 = vmatprep.subr.mxu0 0.0
        %665 = vmatpush1.xpose.msra.mxu0 0.0
        %666 = vmatprep.subr.mxu0 0.0
        %667 = vmatpush1.xpose.msra.mxu0 0.0
        %668 = vmatprep.subr.mxu0 0.0
        %669 = vmatpush1.xpose.msra.mxu0 0.0
        %670 = vmatprep.subr.mxu0 0.0
        %671 = vmatpush1.xpose.msra.mxu0 0.0
        %672 = vmatprep.subr.mxu0 0.0
        %673 = vmatpush1.xpose.msra.mxu0 0.0
        %674 = vmatprep.subr.mxu0 0.0
        %675 = vmatpush1.xpose.msra.mxu0 0.0
        %676 = vmatprep.subr.mxu0 0.0
        %677 = vmatpush1.xpose.msra.mxu0 0.0
        %678 = vmatprep.subr.mxu0 0.0
        %679 = vmatpush1.xpose.msra.mxu0 0.0
        %680 = vmatprep.subr.mxu0 0.0
        %681 = vmatpush1.xpose.msra.mxu0 0.0
        %682 = vmatprep.subr.mxu0 0.0
        %683 = vmatpush1.xpose.msra.mxu0 0.0
        %684 = vmatprep.subr.mxu0 0.0
        %685 = vmatpush1.xpose.msra.mxu0 0.0
        %686 = vmatprep.subr.mxu0 0.0
        %687 = vmatpush1.xpose.msra.mxu0 0.0
        %688 = vmatprep.subr.mxu0 0.0
        %689 = vmatpush1.xpose.msra.mxu0 0.0
        %690 = vmatprep.subr.mxu0 0.0
        %691 = vmatpush1.xpose.msra.mxu0 0.0
        %692 = vmatprep.subr.mxu0 0.0
        %693 = vmatpush1.xpose.msra.mxu0 0.0
        %694 = vmatprep.subr.mxu0 0.0
        %695 = vmatpush1.xpose.msra.mxu0 0.0
        %696 = vmatprep.subr.mxu0 0.0
        %697 = vmatpush1.xpose.msra.mxu0 0.0
        %698 = vmatprep.subr.mxu0 0.0
        %699 = vmatpush1.xpose.msra.mxu0 0.0
        %700 = vmatprep.subr.mxu0 0.0
        %701 = vmatpush1.xpose.msra.mxu0 0.0
        %702 = vmatprep.subr.mxu0 0.0
        %703 = vmatpush1.xpose.msra.mxu0 0.0
        %704 = vmatprep.subr.mxu0 0.0
        %705 = vmatpush1.xpose.msra.mxu0 0.0
        %706 = vmatprep.subr.mxu0 0.0
        %707 = vmatpush1.xpose.msra.mxu0 0.0
        %708 = vmatprep.subr.mxu0 0.0
        %709 = vmatpush1.xpose.msra.mxu0 0.0
        %710 = vmatprep.subr.mxu0 0.0
        %711 = vmatpush1.xpose.msra.mxu0 0.0
        %712 = vmatprep.subr.mxu0 0.0
        %713 = vmatpush1.xpose.msra.mxu0 0.0
        %714 = vmatprep.subr.mxu0 0.0
        %715 = vmatpush1.xpose.msra.mxu0 0.0
        %716 = vmatprep.mubr.f32.mxu0 0.0
        %717 = vmatmul.mubr.f32.gmra.mrb[0].mxu0 %v647
        %v718 = vpop.f32.mrb[0].mxu0
        %v719 = vadd.f32 0.0, %v718
        %v720 = vpop.f32.mrb[0].mxu0
        %721 = vdwg.mxu0
        %v722 = vmul.f32 %v719, 0.35355338
        %v723 = vsel %vm640, %v722, -1e+30
        %v724 = vsel %vm645, %v723, -inf
        %725 = vmax.xlane.f32.xlu0 %v724
        %v726 = vpop.xlane.xlu0 %725
        %v727 = vsub.f32 %v723, %v726
        %v728 = vmul.f32 %v727, 1.442695
        %v729 = vpow.pop %v728
        %v730 = vsel %vm645, %v729, 0.0
        %731 = vadd.xlane.f32.xlu0 %v730
        %v732 = vpop.xlane.xlu0 %731
        %v733 = vrcp.pop %v732
        %v734 = vmul.f32 %v729, %v733
        %v736 = vsel %vm645, %v734, 0
        %738 = vmatprep.subr.mxu0 0.0
        %739 = vmatpush1.msra.mxu0 %v633
        %740 = vmatprep.subr.mxu0 0.0
        %741 = vmatpush1.msra.mxu0 0.0
        %742 = vmatprep.subr.mxu0 0.0
        %743 = vmatpush1.msra.mxu0 0.0
        %744 = vmatprep.subr.mxu0 0.0
        %745 = vmatpush1.msra.mxu0 0.0
        %746 = vmatprep.subr.mxu0 0.0
        %747 = vmatpush1.msra.mxu0 0.0
        %748 = vmatprep.subr.mxu0 0.0
        %749 = vmatpush1.msra.mxu0 0.0
        %750 = vmatprep.subr.mxu0 0.0
        %751 = vmatpush1.msra.mxu0 0.0
        %752 = vmatprep.subr.mxu0 0.0
        %753 = vmatpush1.msra.mxu0 0.0
        %754 = vmatprep.subr.mxu0 0.0
        %755 = vmatpush1.msra.mxu0 0.0
        %756 = vmatprep.subr.mxu0 0.0
        %757 = vmatpush1.msra.mxu0 0.0
        %758 = vmatprep.subr.mxu0 0.0
        %759 = vmatpush1.msra.mxu0 0.0
        %760 = vmatprep.subr.mxu0 0.0
        %761 = vmatpush1.msra.mxu0 0.0
        %762 = vmatprep.subr.mxu0 0.0
        %763 = vmatpush1.msra.mxu0 0.0
        %764 = vmatprep.subr.mxu0 0.0
        %765 = vmatpush1.msra.mxu0 0.0
        %766 = vmatprep.subr.mxu0 0.0
        %767 = vmatpush1.msra.mxu0 0.0
        %768 = vmatprep.subr.mxu0 0.0
        %769 = vmatpush1.msra.mxu0 0.0
        %770 = vmatprep.subr.mxu0 0.0
        %771 = vmatpush1.msra.mxu0 0.0
        %772 = vmatprep.subr.mxu0 0.0
        %773 = vmatpush1.msra.mxu0 0.0
        %774 = vmatprep.subr.mxu0 0.0
        %775 = vmatpush1.msra.mxu0 0.0
        %776 = vmatprep.subr.mxu0 0.0
        %777 = vmatpush1.msra.mxu0 0.0
        %778 = vmatprep.subr.mxu0 0.0
        %779 = vmatpush1.msra.mxu0 0.0
        %780 = vmatprep.subr.mxu0 0.0
        %781 = vmatpush1.msra.mxu0 0.0
        %782 = vmatprep.subr.mxu0 0.0
        %783 = vmatpush1.msra.mxu0 0.0
        %784 = vmatprep.subr.mxu0 0.0
        %785 = vmatpush1.msra.mxu0 0.0
        %786 = vmatprep.subr.mxu0 0.0
        %787 = vmatpush1.msra.mxu0 0.0
        %788 = vmatprep.subr.mxu0 0.0
        %789 = vmatpush1.msra.mxu0 0.0
        %790 = vmatprep.subr.mxu0 0.0
        %791 = vmatpush1.msra.mxu0 0.0
        %792 = vmatprep.subr.mxu0 0.0
        %793 = vmatpush1.msra.mxu0 0.0
        %794 = vmatprep.subr.mxu0 0.0
        %795 = vmatpush1.msra.mxu0 0.0
        %796 = vmatprep.subr.mxu0 0.0
        %797 = vmatpush1.msra.mxu0 0.0
        %798 = vmatprep.subr.mxu0 0.0
        %799 = vmatpush1.msra.mxu0 0.0
        %800 = vmatprep.subr.mxu0 0.0
        %801 = vmatpush1.msra.mxu0 0.0
        %802 = vmatprep.mubr.f32.mxu0 0.0
        %803 = vmatmul.mubr.f32.gmra.mrb[0].mxu0 %v736
        %v804 = vpop.f32.mrb[0].mxu0
        %v805 = vadd.f32 0.0, %v804
        %v806 = vpop.f32.mrb[0].mxu0
        %807 = vdwg.mxu0
        %808 = vrot.lane.b32.xlu0 %v485, 120
        %v809 = vpop.permute.xlu0 %808
        %810 = vrot.lane.b32.xlu0 %v559, 120
        %v811 = vpop.permute.xlu0 %810
        %v812 = vsel %vm645, %v809, 0
        %v814 = vsel %vm645, %v811, 0
        %816 = vmatprep.subr.mxu0 0.0
        %817 = vmatpush1.xpose.msra.mxu0 %v814
        %818 = vmatprep.subr.mxu0 0.0
        %819 = vmatpush1.xpose.msra.mxu0 0.0
        %820 = vmatprep.subr.mxu0 0.0
        %821 = vmatpush1.xpose.msra.mxu0 0.0
        %822 = vmatprep.subr.mxu0 0.0
        %823 = vmatpush1.xpose.msra.mxu0 0.0
        %824 = vmatprep.subr.mxu0 0.0
        %825 = vmatpush1.xpose.msra.mxu0 0.0
        %826 = vmatprep.subr.mxu0 0.0
        %827 = vmatpush1.xpose.msra.mxu0 0.0
        %828 = vmatprep.subr.mxu0 0.0
        %829 = vmatpush1.xpose.msra.mxu0 0.0
        %830 = vmatprep.subr.mxu0 0.0
        %831 = vmatpush1.xpose.msra.mxu0 0.0
        %832 = vmatprep.subr.mxu0 0.0
        %833 = vmatpush1.xpose.msra.mxu0 0.0
        %834 = vmatprep.subr.mxu0 0.0
        %835 = vmatpush1.xpose.msra.mxu0 0.0
        %836 = vmatprep.subr.mxu0 0.0
        %837 = vmatpush1.xpose.msra.mxu0 0.0
        %838 = vmatprep.subr.mxu0 0.0
        %839 = vmatpush1.xpose.msra.mxu0 0.0
        %840 = vmatprep.subr.mxu0 0.0
        %841 = vmatpush1.xpose.msra.mxu0 0.0
        %842 = vmatprep.subr.mxu0 0.0
        %843 = vmatpush1.xpose.msra.mxu0 0.0
        %844 = vmatprep.subr.mxu0 0.0
        %845 = vmatpush1.xpose.msra.mxu0 0.0
        %846 = vmatprep.subr.mxu0 0.0
        %847 = vmatpush1.xpose.msra.mxu0 0.0
        %848 = vmatprep.subr.mxu0 0.0
        %849 = vmatpush1.xpose.msra.mxu0 0.0
        %850 = vmatprep.subr.mxu0 0.0
        %851 = vmatpush1.xpose.msra.mxu0 0.0
        %852 = vmatprep.subr.mxu0 0.0
        %853 = vmatpush1.xpose.msra.mxu0 0.0
        %854 = vmatprep.subr.mxu0 0.0
        %855 = vmatpush1.xpose.msra.mxu0 0.0
        %856 = vmatprep.subr.mxu0 0.0
        %857 = vmatpush1.xpose.msra.mxu0 0.0
        %858 = vmatprep.subr.mxu0 0.0
        %859 = vmatpush1.xpose.msra.mxu0 0.0
        %860 = vmatprep.subr.mxu0 0.0
        %861 = vmatpush1.xpose.msra.mxu0 0.0
        %862 = vmatprep.subr.mxu0 0.0
        %863 = vmatpush1.xpose.msra.mxu0 0.0
        %864 = vmatprep.subr.mxu0 0.0
        %865 = vmatpush1.xpose.msra.mxu0 0.0
        %866 = vmatprep.subr.mxu0 0.0
        %867 = vmatpush1.xpose.msra.mxu0 0.0
        %868 = vmatprep.subr.mxu0 0.0
        %869 = vmatpush1.xpose.msra.mxu0 0.0
        %870 = vmatprep.subr.mxu0 0.0
        %871 = vmatpush1.xpose.msra.mxu0 0.0
        %872 = vmatprep.subr.mxu0 0.0
        %873 = vmatpush1.xpose.msra.mxu0 0.0
        %874 = vmatprep.subr.mxu0 0.0
        %875 = vmatpush1.xpose.msra.mxu0 0.0
        %876 = vmatprep.subr.mxu0 0.0
        %877 = vmatpush1.xpose.msra.mxu0 0.0
        %878 = vmatprep.subr.mxu0 0.0
        %879 = vmatpush1.xpose.msra.mxu0 0.0
        %880 = vmatprep.mubr.f32.mxu0 0.0
        %881 = vmatmul.mubr.f32.gmra.mrb[0].mxu0 %v812
        %v882 = vpop.f32.mrb[0].mxu0
        %v883 = vadd.f32 0.0, %v882
        %v884 = vpop.f32.mrb[0].mxu0
        %885 = vdwg.mxu0
        %v886 = vmul.f32 %v883, 0.35355338
        %v887 = vsel %vm640, %v886, -1e+30
        %v888 = vsel %vm645, %v887, -inf
        %889 = vmax.xlane.f32.xlu0 %v888
        %v890 = vpop.xlane.xlu0 %889
        %v891 = vsub.f32 %v887, %v890
        %v892 = vmul.f32 %v891, 1.442695
        %v893 = vpow.pop %v892
        %v894 = vsel %vm645, %v893, 0.0
        %895 = vadd.xlane.f32.xlu0 %v894
        %v896 = vpop.xlane.xlu0 %895
        %v897 = vrcp.pop %v896
        %v898 = vmul.f32 %v893, %v897
        %900 = vrot.lane.b32.xlu0 %v633, 120
        %v901 = vpop.permute.xlu0 %900
        %v904 = vsel %vm645, %v898, 0
        %906 = vmatprep.subr.mxu0 0.0
        %907 = vmatpush1.msra.mxu0 %v901
        %908 = vmatprep.subr.mxu0 0.0
        %909 = vmatpush1.msra.mxu0 0.0
        %910 = vmatprep.subr.mxu0 0.0
        %911 = vmatpush1.msra.mxu0 0.0
        %912 = vmatprep.subr.mxu0 0.0
        %913 = vmatpush1.msra.mxu0 0.0
        %914 = vmatprep.subr.mxu0 0.0
        %915 = vmatpush1.msra.mxu0 0.0
        %916 = vmatprep.subr.mxu0 0.0
        %917 = vmatpush1.msra.mxu0 0.0
        %918 = vmatprep.subr.mxu0 0.0
        %919 = vmatpush1.msra.mxu0 0.0
        %920 = vmatprep.subr.mxu0 0.0
        %921 = vmatpush1.msra.mxu0 0.0
        %922 = vmatprep.subr.mxu0 0.0
        %923 = vmatpush1.msra.mxu0 0.0
        %924 = vmatprep.subr.mxu0 0.0
        %925 = vmatpush1.msra.mxu0 0.0
        %926 = vmatprep.subr.mxu0 0.0
        %927 = vmatpush1.msra.mxu0 0.0
        %928 = vmatprep.subr.mxu0 0.0
        %929 = vmatpush1.msra.mxu0 0.0
        %930 = vmatprep.subr.mxu0 0.0
        %931 = vmatpush1.msra.mxu0 0.0
        %932 = vmatprep.subr.mxu0 0.0
        %933 = vmatpush1.msra.mxu0 0.0
        %934 = vmatprep.subr.mxu0 0.0
        %935 = vmatpush1.msra.mxu0 0.0
        %936 = vmatprep.subr.mxu0 0.0
        %937 = vmatpush1.msra.mxu0 0.0
        %938 = vmatprep.subr.mxu0 0.0
        %939 = vmatpush1.msra.mxu0 0.0
        %940 = vmatprep.subr.mxu0 0.0
        %941 = vmatpush1.msra.mxu0 0.0
        %942 = vmatprep.subr.mxu0 0.0
        %943 = vmatpush1.msra.mxu0 0.0
        %944 = vmatprep.subr.mxu0 0.0
        %945 = vmatpush1.msra.mxu0 0.0
        %946 = vmatprep.subr.mxu0 0.0
        %947 = vmatpush1.msra.mxu0 0.0
        %948 = vmatprep.subr.mxu0 0.0
        %949 = vmatpush1.msra.mxu0 0.0
        %950 = vmatprep.subr.mxu0 0.0
        %951 = vmatpush1.msra.mxu0 0.0
        %952 = vmatprep.subr.mxu0 0.0
        %953 = vmatpush1.msra.mxu0 0.0
        %954 = vmatprep.subr.mxu0 0.0
        %955 = vmatpush1.msra.mxu0 0.0
        %956 = vmatprep.subr.mxu0 0.0
        %957 = vmatpush1.msra.mxu0 0.0
        %958 = vmatprep.subr.mxu0 0.0
        %959 = vmatpush1.msra.mxu0 0.0
        %960 = vmatprep.subr.mxu0 0.0
        %961 = vmatpush1.msra.mxu0 0.0
        %962 = vmatprep.subr.mxu0 0.0
        %963 = vmatpush1.msra.mxu0 0.0
        %964 = vmatprep.subr.mxu0 0.0
        %965 = vmatpush1.msra.mxu0 0.0
        %966 = vmatprep.subr.mxu0 0.0
        %967 = vmatpush1.msra.mxu0 0.0
        %968 = vmatprep.subr.mxu0 0.0
        %969 = vmatpush1.msra.mxu0 0.0
        %970 = vmatprep.mubr.f32.mxu0 0.0
        %971 = vmatmul.mubr.f32.gmra.mrb[0].mxu0 %v904
        %v972 = vpop.f32.mrb[0].mxu0
        %v973 = vadd.f32 0.0, %v972
        %v974 = vpop.f32.mrb[0].mxu0
        %975 = vdwg.mxu0
        %v977 = vsel %vm645, %v973, 0
        %979 = vmatprep.subr.mxu0 0.0
        %980 = vmatpush1.msra.mxu0 %v642
        %981 = vmatprep.subr.mxu0 0.0
        %982 = vmatpush1.msra.mxu0 0.0
        %983 = vmatprep.subr.mxu0 0.0
        %984 = vmatpush1.msra.mxu0 0.0
        %985 = vmatprep.subr.mxu0 0.0
        %986 = vmatpush1.msra.mxu0 0.0
        %987 = vmatprep.subr.mxu0 0.0
        %988 = vmatpush1.msra.mxu0 0.0
        %989 = vmatprep.subr.mxu0 0.0
        %990 = vmatpush1.msra.mxu0 0.0
        %991 = vmatprep.subr.mxu0 0.0
        %992 = vmatpush1.msra.mxu0 0.0
        %993 = vmatprep.subr.mxu0 0.0
        %994 = vmatpush1.msra.mxu0 0.0
        %995 = vmatprep.subr.mxu0 0.0
        %996 = vmatpush1.msra.mxu0 0.0
        %997 = vmatprep.subr.mxu0 0.0
        %998 = vmatpush1.msra.mxu0 0.0
        %999 = vmatprep.subr.mxu0 0.0
        %1000 = vmatpush1.msra.mxu0 0.0
        %1001 = vmatprep.subr.mxu0 0.0
        %1002 = vmatpush1.msra.mxu0 0.0
        %1003 = vmatprep.subr.mxu0 0.0
        %1004 = vmatpush1.msra.mxu0 0.0
        %1005 = vmatprep.subr.mxu0 0.0
        %1006 = vmatpush1.msra.mxu0 0.0
        %1007 = vmatprep.subr.mxu0 0.0
        %1008 = vmatpush1.msra.mxu0 0.0
        %1009 = vmatprep.subr.mxu0 0.0
        %1010 = vmatpush1.msra.mxu0 0.0
        %1011 = vmatprep.subr.mxu0 0.0
        %1012 = vmatpush1.msra.mxu0 0.0
        %1013 = vmatprep.subr.mxu0 0.0
        %1014 = vmatpush1.msra.mxu0 0.0
        %1015 = vmatprep.subr.mxu0 0.0
        %1016 = vmatpush1.msra.mxu0 0.0
        %1017 = vmatprep.subr.mxu0 0.0
        %1018 = vmatpush1.msra.mxu0 0.0
        %1019 = vmatprep.subr.mxu0 0.0
        %1020 = vmatpush1.msra.mxu0 0.0
        %1021 = vmatprep.subr.mxu0 0.0
        %1022 = vmatpush1.msra.mxu0 0.0
        %1023 = vmatprep.subr.mxu0 0.0
        %1024 = vmatpush1.msra.mxu0 0.0
        %1025 = vmatprep.subr.mxu0 0.0
        %1026 = vmatpush1.msra.mxu0 0.0
        %1027 = vmatprep.subr.mxu0 0.0
        %1028 = vmatpush1.msra.mxu0 0.0
        %1029 = vmatprep.subr.mxu0 0.0
        %1030 = vmatpush1.msra.mxu0 0.0
        %1031 = vmatprep.subr.mxu0 0.0
        %1032 = vmatpush1.msra.mxu0 0.0
        %1033 = vmatprep.subr.mxu0 0.0
        %1034 = vmatpush1.msra.mxu0 0.0
        %1035 = vmatprep.subr.mxu0 0.0
        %1036 = vmatpush1.msra.mxu0 0.0
        %1037 = vmatprep.subr.mxu0 0.0
        %1038 = vmatpush1.msra.mxu0 0.0
        %1039 = vmatprep.subr.mxu0 0.0
        %1040 = vmatpush1.msra.mxu0 0.0
        %1041 = vmatprep.subr.mxu0 0.0
        %1042 = vmatpush1.msra.mxu0 0.0
        %1043 = vmatprep.mubr.f32.mxu0 0.0
        %1044 = vmatmul.mubr.f32.gmra.mrb[0].mxu0 %v977
        %v1045 = vpop.f32.mrb[0].mxu0
        %v1046 = vadd.f32 0.0, %v1045
        %v1047 = vpop.f32.mrb[0].mxu0
        %1048 = vdwg.mxu0
        %v1050 = vsel %vm645, %v805, 0
        %1052 = vmatprep.subr.mxu0 0.0
        %1053 = vmatpush1.msra.mxu0 %v641
        %1054 = vmatprep.subr.mxu0 0.0
        %1055 = vmatpush1.msra.mxu0 0.0
        %1056 = vmatprep.subr.mxu0 0.0
        %1057 = vmatpush1.msra.mxu0 0.0
        %1058 = vmatprep.subr.mxu0 0.0
        %1059 = vmatpush1.msra.mxu0 0.0
        %1060 = vmatprep.subr.mxu0 0.0
        %1061 = vmatpush1.msra.mxu0 0.0
        %1062 = vmatprep.subr.mxu0 0.0
        %1063 = vmatpush1.msra.mxu0 0.0
        %1064 = vmatprep.subr.mxu0 0.0
        %1065 = vmatpush1.msra.mxu0 0.0
        %1066 = vmatprep.subr.mxu0 0.0
        %1067 = vmatpush1.msra.mxu0 0.0
        %1068 = vmatprep.subr.mxu0 0.0
        %1069 = vmatpush1.msra.mxu0 0.0
        %1070 = vmatprep.subr.mxu0 0.0
        %1071 = vmatpush1.msra.mxu0 0.0
        %1072 = vmatprep.subr.mxu0 0.0
        %1073 = vmatpush1.msra.mxu0 0.0
        %1074 = vmatprep.subr.mxu0 0.0
        %1075 = vmatpush1.msra.mxu0 0.0
        %1076 = vmatprep.subr.mxu0 0.0
        %1077 = vmatpush1.msra.mxu0 0.0
        %1078 = vmatprep.subr.mxu0 0.0
        %1079 = vmatpush1.msra.mxu0 0.0
        %1080 = vmatprep.subr.mxu0 0.0
        %1081 = vmatpush1.msra.mxu0 0.0
        %1082 = vmatprep.subr.mxu0 0.0
        %1083 = vmatpush1.msra.mxu0 0.0
        %1084 = vmatprep.subr.mxu0 0.0
        %1085 = vmatpush1.msra.mxu0 0.0
        %1086 = vmatprep.subr.mxu0 0.0
        %1087 = vmatpush1.msra.mxu0 0.0
        %1088 = vmatprep.subr.mxu0 0.0
        %1089 = vmatpush1.msra.mxu0 0.0
        %1090 = vmatprep.subr.mxu0 0.0
        %1091 = vmatpush1.msra.mxu0 0.0
        %1092 = vmatprep.subr.mxu0 0.0
        %1093 = vmatpush1.msra.mxu0 0.0
        %1094 = vmatprep.subr.mxu0 0.0
        %1095 = vmatpush1.msra.mxu0 0.0
        %1096 = vmatprep.subr.mxu0 0.0
        %1097 = vmatpush1.msra.mxu0 0.0
        %1098 = vmatprep.subr.mxu0 0.0
        %1099 = vmatpush1.msra.mxu0 0.0
        %1100 = vmatprep.subr.mxu0 0.0
        %1101 = vmatpush1.msra.mxu0 0.0
        %1102 = vmatprep.subr.mxu0 0.0
        %1103 = vmatpush1.msra.mxu0 0.0
        %1104 = vmatprep.subr.mxu0 0.0
        %1105 = vmatpush1.msra.mxu0 0.0
        %1106 = vmatprep.subr.mxu0 0.0
        %1107 = vmatpush1.msra.mxu0 0.0
        %1108 = vmatprep.subr.mxu0 0.0
        %1109 = vmatpush1.msra.mxu0 0.0
        %1110 = vmatprep.subr.mxu0 0.0
        %1111 = vmatpush1.msra.mxu0 0.0
        %1112 = vmatprep.subr.mxu0 0.0
        %1113 = vmatpush1.msra.mxu0 0.0
        %1114 = vmatprep.subr.mxu0 0.0
        %1115 = vmatpush1.msra.mxu0 0.0
        %1116 = vmatprep.mubr.f32.mxu0 0.0
        %1117 = vmatmul.mubr.f32.gmra.mrb[0].mxu0 %v1050
        %v1118 = vpop.f32.mrb[0].mxu0
        %v1119 = vadd.f32 %v1046, %v1118
        %v1120 = vpop.f32.mrb[0].mxu0
        %1121 = vdwg.mxu0
        %1122 = vrot.lane.b32.xlu0 %v485, 112
        %v1123 = vpop.permute.xlu0 %1122
        %1124 = vrot.lane.b32.xlu0 %v559, 112
        %v1125 = vpop.permute.xlu0 %1124
        %v1126 = vsel %vm645, %v1123, 0
        %v1128 = vsel %vm645, %v1125, 0
        %1130 = vmatprep.subr.mxu0 0.0
        %1131 = vmatpush1.xpose.msra.mxu0 %v1128
        %1132 = vmatprep.subr.mxu0 0.0
        %1133 = vmatpush1.xpose.msra.mxu0 0.0
        %1134 = vmatprep.subr.mxu0 0.0
        %1135 = vmatpush1.xpose.msra.mxu0 0.0
        %1136 = vmatprep.subr.mxu0 0.0
        %1137 = vmatpush1.xpose.msra.mxu0 0.0
        %1138 = vmatprep.subr.mxu0 0.0
        %1139 = vmatpush1.xpose.msra.mxu0 0.0
        %1140 = vmatprep.subr.mxu0 0.0
        %1141 = vmatpush1.xpose.msra.mxu0 0.0
        %1142 = vmatprep.subr.mxu0 0.0
        %1143 = vmatpush1.xpose.msra.mxu0 0.0
        %1144 = vmatprep.subr.mxu0 0.0
        %1145 = vmatpush1.xpose.msra.mxu0 0.0
        %1146 = vmatprep.subr.mxu0 0.0
        %1147 = vmatpush1.xpose.msra.mxu0 0.0
        %1148 = vmatprep.subr.mxu0 0.0
        %1149 = vmatpush1.xpose.msra.mxu0 0.0
        %1150 = vmatprep.subr.mxu0 0.0
        %1151 = vmatpush1.xpose.msra.mxu0 0.0
        %1152 = vmatprep.subr.mxu0 0.0
        %1153 = vmatpush1.xpose.msra.mxu0 0.0
        %1154 = vmatprep.subr.mxu0 0.0
        %1155 = vmatpush1.xpose.msra.mxu0 0.0
        %1156 = vmatprep.subr.mxu0 0.0
        %1157 = vmatpush1.xpose.msra.mxu0 0.0
        %1158 = vmatprep.subr.mxu0 0.0
        %1159 = vmatpush1.xpose.msra.mxu0 0.0
        %1160 = vmatprep.subr.mxu0 0.0
        %1161 = vmatpush1.xpose.msra.mxu0 0.0
        %1162 = vmatprep.subr.mxu0 0.0
        %1163 = vmatpush1.xpose.msra.mxu0 0.0
        %1164 = vmatprep.subr.mxu0 0.0
        %1165 = vmatpush1.xpose.msra.mxu0 0.0
        %1166 = vmatprep.subr.mxu0 0.0
        %1167 = vmatpush1.xpose.msra.mxu0 0.0
        %1168 = vmatprep.subr.mxu0 0.0
        %1169 = vmatpush1.xpose.msra.mxu0 0.0
        %1170 = vmatprep.subr.mxu0 0.0
        %1171 = vmatpush1.xpose.msra.mxu0 0.0
        %1172 = vmatprep.subr.mxu0 0.0
        %1173 = vmatpush1.xpose.msra.mxu0 0.0
        %1174 = vmatprep.subr.mxu0 0.0
        %1175 = vmatpush1.xpose.msra.mxu0 0.0
        %1176 = vmatprep.subr.mxu0 0.0
        %1177 = vmatpush1.xpose.msra.mxu0 0.0
        %1178 = vmatprep.subr.mxu0 0.0
        %1179 = vmatpush1.xpose.msra.mxu0 0.0
        %1180 = vmatprep.subr.mxu0 0.0
        %1181 = vmatpush1.xpose.msra.mxu0 0.0
        %1182 = vmatprep.subr.mxu0 0.0
        %1183 = vmatpush1.xpose.msra.mxu0 0.0
        %1184 = vmatprep.subr.mxu0 0.0
        %1185 = vmatpush1.xpose.msra.mxu0 0.0
        %1186 = vmatprep.subr.mxu0 0.0
        %1187 = vmatpush1.xpose.msra.mxu0 0.0
        %1188 = vmatprep.subr.mxu0 0.0
        %1189 = vmatpush1.xpose.msra.mxu0 0.0
        %1190 = vmatprep.subr.mxu0 0.0
        %1191 = vmatpush1.xpose.msra.mxu0 0.0
        %1192 = vmatprep.subr.mxu0 0.0
        %1193 = vmatpush1.xpose.msra.mxu0 0.0
        %1194 = vmatprep.mubr.f32.mxu0 0.0
        %1195 = vmatmul.mubr.f32.gmra.mrb[0].mxu0 %v1126
        %v1196 = vpop.f32.mrb[0].mxu0
        %v1197 = vadd.f32 0.0, %v1196
        %v1198 = vpop.f32.mrb[0].mxu0
        %1199 = vdwg.mxu0
        %v1200 = vmul.f32 %v1197, 0.35355338
        %v1201 = vsel %vm640, %v1200, -1e+30
        %v1202 = vsel %vm645, %v1201, -inf
        %1203 = vmax.xlane.f32.xlu0 %v1202
        %v1204 = vpop.xlane.xlu0 %1203
        %v1205 = vsub.f32 %v1201, %v1204
        %v1206 = vmul.f32 %v1205, 1.442695
        %v1207 = vpow.pop %v1206
        %v1208 = vsel %vm645, %v1207, 0.0
        %1209 = vadd.xlane.f32.xlu0 %v1208
        %v1210 = vpop.xlane.xlu0 %1209
        %v1211 = vrcp.pop %v1210
        %v1212 = vmul.f32 %v1207, %v1211
        %1213 = vrot.lane.b32.xlu0 %v633, 112
        %v1214 = vpop.permute.xlu0 %1213
        %v1217 = vsel %vm645, %v1212, 0
        %1219 = vmatprep.subr.mxu0 0.0
        %1220 = vmatpush1.msra.mxu0 %v1214
        %1221 = vmatprep.subr.mxu0 0.0
        %1222 = vmatpush1.msra.mxu0 0.0
        %1223 = vmatprep.subr.mxu0 0.0
        %1224 = vmatpush1.msra.mxu0 0.0
        %1225 = vmatprep.subr.mxu0 0.0
        %1226 = vmatpush1.msra.mxu0 0.0
        %1227 = vmatprep.subr.mxu0 0.0
        %1228 = vmatpush1.msra.mxu0 0.0
        %1229 = vmatprep.subr.mxu0 0.0
        %1230 = vmatpush1.msra.mxu0 0.0
        %1231 = vmatprep.subr.mxu0 0.0
        %1232 = vmatpush1.msra.mxu0 0.0
        %1233 = vmatprep.subr.mxu0 0.0
        %1234 = vmatpush1.msra.mxu0 0.0
        %1235 = vmatprep.subr.mxu0 0.0
        %1236 = vmatpush1.msra.mxu0 0.0
        %1237 = vmatprep.subr.mxu0 0.0
        %1238 = vmatpush1.msra.mxu0 0.0
        %1239 = vmatprep.subr.mxu0 0.0
        %1240 = vmatpush1.msra.mxu0 0.0
        %1241 = vmatprep.subr.mxu0 0.0
        %1242 = vmatpush1.msra.mxu0 0.0
        %1243 = vmatprep.subr.mxu0 0.0
        %1244 = vmatpush1.msra.mxu0 0.0
        %1245 = vmatprep.subr.mxu0 0.0
        %1246 = vmatpush1.msra.mxu0 0.0
        %1247 = vmatprep.subr.mxu0 0.0
        %1248 = vmatpush1.msra.mxu0 0.0
        %1249 = vmatprep.subr.mxu0 0.0
        %1250 = vmatpush1.msra.mxu0 0.0
        %1251 = vmatprep.subr.mxu0 0.0
        %1252 = vmatpush1.msra.mxu0 0.0
        %1253 = vmatprep.subr.mxu0 0.0
        %1254 = vmatpush1.msra.mxu0 0.0
        %1255 = vmatprep.subr.mxu0 0.0
        %1256 = vmatpush1.msra.mxu0 0.0
        %1257 = vmatprep.subr.mxu0 0.0
        %1258 = vmatpush1.msra.mxu0 0.0
        %1259 = vmatprep.subr.mxu0 0.0
        %1260 = vmatpush1.msra.mxu0 0.0
        %1261 = vmatprep.subr.mxu0 0.0
        %1262 = vmatpush1.msra.mxu0 0.0
        %1263 = vmatprep.subr.mxu0 0.0
        %1264 = vmatpush1.msra.mxu0 0.0
        %1265 = vmatprep.subr.mxu0 0.0
        %1266 = vmatpush1.msra.mxu0 0.0
        %1267 = vmatprep.subr.mxu0 0.0
        %1268 = vmatpush1.msra.mxu0 0.0
        %1269 = vmatprep.subr.mxu0 0.0
        %1270 = vmatpush1.msra.mxu0 0.0
        %1271 = vmatprep.subr.mxu0 0.0
        %1272 = vmatpush1.msra.mxu0 0.0
        %1273 = vmatprep.subr.mxu0 0.0
        %1274 = vmatpush1.msra.mxu0 0.0
        %1275 = vmatprep.subr.mxu0 0.0
        %1276 = vmatpush1.msra.mxu0 0.0
        %1277 = vmatprep.subr.mxu0 0.0
        %1278 = vmatpush1.msra.mxu0 0.0
        %1279 = vmatprep.subr.mxu0 0.0
        %1280 = vmatpush1.msra.mxu0 0.0
        %1281 = vmatprep.subr.mxu0 0.0
        %1282 = vmatpush1.msra.mxu0 0.0
        %1283 = vmatprep.mubr.f32.mxu0 0.0
        %1284 = vmatmul.mubr.f32.gmra.mrb[0].mxu0 %v1217
        %v1285 = vpop.f32.mrb[0].mxu0
        %v1286 = vadd.f32 0.0, %v1285
        %v1287 = vpop.f32.mrb[0].mxu0
        %1288 = vdwg.mxu0
        %v1290 = vsel %vm645, %v1286, 0
        %1292 = vmatprep.subr.mxu0 0.0
        %1293 = vmatpush1.msra.mxu0 %v643
        %1294 = vmatprep.subr.mxu0 0.0
        %1295 = vmatpush1.msra.mxu0 0.0
        %1296 = vmatprep.subr.mxu0 0.0
        %1297 = vmatpush1.msra.mxu0 0.0
        %1298 = vmatprep.subr.mxu0 0.0
        %1299 = vmatpush1.msra.mxu0 0.0
        %1300 = vmatprep.subr.mxu0 0.0
        %1301 = vmatpush1.msra.mxu0 0.0
        %1302 = vmatprep.subr.mxu0 0.0
        %1303 = vmatpush1.msra.mxu0 0.0
        %1304 = vmatprep.subr.mxu0 0.0
        %1305 = vmatpush1.msra.mxu0 0.0
        %1306 = vmatprep.subr.mxu0 0.0
        %1307 = vmatpush1.msra.mxu0 0.0
        %1308 = vmatprep.subr.mxu0 0.0
        %1309 = vmatpush1.msra.mxu0 0.0
        %1310 = vmatprep.subr.mxu0 0.0
        %1311 = vmatpush1.msra.mxu0 0.0
        %1312 = vmatprep.subr.mxu0 0.0
        %1313 = vmatpush1.msra.mxu0 0.0
        %1314 = vmatprep.subr.mxu0 0.0
        %1315 = vmatpush1.msra.mxu0 0.0
        %1316 = vmatprep.subr.mxu0 0.0
        %1317 = vmatpush1.msra.mxu0 0.0
        %1318 = vmatprep.subr.mxu0 0.0
        %1319 = vmatpush1.msra.mxu0 0.0
        %1320 = vmatprep.subr.mxu0 0.0
        %1321 = vmatpush1.msra.mxu0 0.0
        %1322 = vmatprep.subr.mxu0 0.0
        %1323 = vmatpush1.msra.mxu0 0.0
        %1324 = vmatprep.subr.mxu0 0.0
        %1325 = vmatpush1.msra.mxu0 0.0
        %1326 = vmatprep.subr.mxu0 0.0
        %1327 = vmatpush1.msra.mxu0 0.0
        %1328 = vmatprep.subr.mxu0 0.0
        %1329 = vmatpush1.msra.mxu0 0.0
        %1330 = vmatprep.subr.mxu0 0.0
        %1331 = vmatpush1.msra.mxu0 0.0
        %1332 = vmatprep.subr.mxu0 0.0
        %1333 = vmatpush1.msra.mxu0 0.0
        %1334 = vmatprep.subr.mxu0 0.0
        %1335 = vmatpush1.msra.mxu0 0.0
        %1336 = vmatprep.subr.mxu0 0.0
        %1337 = vmatpush1.msra.mxu0 0.0
        %1338 = vmatprep.subr.mxu0 0.0
        %1339 = vmatpush1.msra.mxu0 0.0
        %1340 = vmatprep.subr.mxu0 0.0
        %1341 = vmatpush1.msra.mxu0 0.0
        %1342 = vmatprep.subr.mxu0 0.0
        %1343 = vmatpush1.msra.mxu0 0.0
        %1344 = vmatprep.subr.mxu0 0.0
        %1345 = vmatpush1.msra.mxu0 0.0
        %1346 = vmatprep.subr.mxu0 0.0
        %1347 = vmatpush1.msra.mxu0 0.0
        %1348 = vmatprep.subr.mxu0 0.0
        %1349 = vmatpush1.msra.mxu0 0.0
        %1350 = vmatprep.subr.mxu0 0.0
        %1351 = vmatpush1.msra.mxu0 0.0
        %1352 = vmatprep.subr.mxu0 0.0
        %1353 = vmatpush1.msra.mxu0 0.0
        %1354 = vmatprep.subr.mxu0 0.0
        %1355 = vmatpush1.msra.mxu0 0.0
        %1356 = vmatprep.mubr.f32.mxu0 0.0
        %1357 = vmatmul.mubr.f32.gmra.mrb[0].mxu0 %v1290
        %v1358 = vpop.f32.mrb[0].mxu0
        %v1359 = vadd.f32 0.0, %v1358
        %v1360 = vpop.f32.mrb[0].mxu0
        %1361 = vdwg.mxu0
        %v1362 = vadd.f32 %v1119, %v1359
        %1363 = vrot.lane.b32.xlu0 %v485, 104
        %v1364 = vpop.permute.xlu0 %1363
        %1365 = vrot.lane.b32.xlu0 %v559, 104
        %v1366 = vpop.permute.xlu0 %1365
        %v1367 = vsel %vm645, %v1364, 0
        %v1369 = vsel %vm645, %v1366, 0
        %1371 = vmatprep.subr.mxu0 0.0
        %1372 = vmatpush1.xpose.msra.mxu0 %v1369
        %1373 = vmatprep.subr.mxu0 0.0
        %1374 = vmatpush1.xpose.msra.mxu0 0.0
        %1375 = vmatprep.subr.mxu0 0.0
        %1376 = vmatpush1.xpose.msra.mxu0 0.0
        %1377 = vmatprep.subr.mxu0 0.0
        %1378 = vmatpush1.xpose.msra.mxu0 0.0
        %1379 = vmatprep.subr.mxu0 0.0
        %1380 = vmatpush1.xpose.msra.mxu0 0.0
        %1381 = vmatprep.subr.mxu0 0.0
        %1382 = vmatpush1.xpose.msra.mxu0 0.0
        %1383 = vmatprep.subr.mxu0 0.0
        %1384 = vmatpush1.xpose.msra.mxu0 0.0
        %1385 = vmatprep.subr.mxu0 0.0
        %1386 = vmatpush1.xpose.msra.mxu0 0.0
        %1387 = vmatprep.subr.mxu0 0.0
        %1388 = vmatpush1.xpose.msra.mxu0 0.0
        %1389 = vmatprep.subr.mxu0 0.0
        %1390 = vmatpush1.xpose.msra.mxu0 0.0
        %1391 = vmatprep.subr.mxu0 0.0
        %1392 = vmatpush1.xpose.msra.mxu0 0.0
        %1393 = vmatprep.subr.mxu0 0.0
        %1394 = vmatpush1.xpose.msra.mxu0 0.0
        %1395 = vmatprep.subr.mxu0 0.0
        %1396 = vmatpush1.xpose.msra.mxu0 0.0
        %1397 = vmatprep.subr.mxu0 0.0
        %1398 = vmatpush1.xpose.msra.mxu0 0.0
        %1399 = vmatprep.subr.mxu0 0.0
        %1400 = vmatpush1.xpose.msra.mxu0 0.0
        %1401 = vmatprep.subr.mxu0 0.0
        %1402 = vmatpush1.xpose.msra.mxu0 0.0
        %1403 = vmatprep.subr.mxu0 0.0
        %1404 = vmatpush1.xpose.msra.mxu0 0.0
        %1405 = vmatprep.subr.mxu0 0.0
        %1406 = vmatpush1.xpose.msra.mxu0 0.0
        %1407 = vmatprep.subr.mxu0 0.0
        %1408 = vmatpush1.xpose.msra.mxu0 0.0
        %1409 = vmatprep.subr.mxu0 0.0
        %1410 = vmatpush1.xpose.msra.mxu0 0.0
        %1411 = vmatprep.subr.mxu0 0.0
        %1412 = vmatpush1.xpose.msra.mxu0 0.0
        %1413 = vmatprep.subr.mxu0 0.0
        %1414 = vmatpush1.xpose.msra.mxu0 0.0
        %1415 = vmatprep.subr.mxu0 0.0
        %1416 = vmatpush1.xpose.msra.mxu0 0.0
        %1417 = vmatprep.subr.mxu0 0.0
        %1418 = vmatpush1.xpose.msra.mxu0 0.0
        %1419 = vmatprep.subr.mxu0 0.0
        %1420 = vmatpush1.xpose.msra.mxu0 0.0
        %1421 = vmatprep.subr.mxu0 0.0
        %1422 = vmatpush1.xpose.msra.mxu0 0.0
        %1423 = vmatprep.subr.mxu0 0.0
        %1424 = vmatpush1.xpose.msra.mxu0 0.0
        %1425 = vmatprep.subr.mxu0 0.0
        %1426 = vmatpush1.xpose.msra.mxu0 0.0
        %1427 = vmatprep.subr.mxu0 0.0
        %1428 = vmatpush1.xpose.msra.mxu0 0.0
        %1429 = vmatprep.subr.mxu0 0.0
        %1430 = vmatpush1.xpose.msra.mxu0 0.0
        %1431 = vmatprep.subr.mxu0 0.0
        %1432 = vmatpush1.xpose.msra.mxu0 0.0
        %1433 = vmatprep.subr.mxu0 0.0
        %1434 = vmatpush1.xpose.msra.mxu0 0.0
        %1435 = vmatprep.mubr.f32.mxu0 0.0
        %1436 = vmatmul.mubr.f32.gmra.mrb[0].mxu0 %v1367
        %v1437 = vpop.f32.mrb[0].mxu0
        %v1438 = vadd.f32 0.0, %v1437
        %v1439 = vpop.f32.mrb[0].mxu0
        %1440 = vdwg.mxu0
        %v1441 = vmul.f32 %v1438, 0.35355338
        %v1442 = vsel %vm640, %v1441, -1e+30
        %v1443 = vsel %vm645, %v1442, -inf
        %1444 = vmax.xlane.f32.xlu0 %v1443
        %v1445 = vpop.xlane.xlu0 %1444
        %v1446 = vsub.f32 %v1442, %v1445
        %v1447 = vmul.f32 %v1446, 1.442695
        %v1448 = vpow.pop %v1447
        %v1449 = vsel %vm645, %v1448, 0.0
        %1450 = vadd.xlane.f32.xlu0 %v1449
        %v1451 = vpop.xlane.xlu0 %1450
        %v1452 = vrcp.pop %v1451
        %v1453 = vmul.f32 %v1448, %v1452
        %1454 = vrot.lane.b32.xlu0 %v633, 104
        %v1455 = vpop.permute.xlu0 %1454
        %v1458 = vsel %vm645, %v1453, 0
        %1460 = vmatprep.subr.mxu0 0.0
        %1461 = vmatpush1.msra.mxu0 %v1455
        %1462 = vmatprep.subr.mxu0 0.0
        %1463 = vmatpush1.msra.mxu0 0.0
        %1464 = vmatprep.subr.mxu0 0.0
        %1465 = vmatpush1.msra.mxu0 0.0
        %1466 = vmatprep.subr.mxu0 0.0
        %1467 = vmatpush1.msra.mxu0 0.0
        %1468 = vmatprep.subr.mxu0 0.0
        %1469 = vmatpush1.msra.mxu0 0.0
        %1470 = vmatprep.subr.mxu0 0.0
        %1471 = vmatpush1.msra.mxu0 0.0
        %1472 = vmatprep.subr.mxu0 0.0
        %1473 = vmatpush1.msra.mxu0 0.0
        %1474 = vmatprep.subr.mxu0 0.0
        %1475 = vmatpush1.msra.mxu0 0.0
        %1476 = vmatprep.subr.mxu0 0.0
        %1477 = vmatpush1.msra.mxu0 0.0
        %1478 = vmatprep.subr.mxu0 0.0
        %1479 = vmatpush1.msra.mxu0 0.0
        %1480 = vmatprep.subr.mxu0 0.0
        %1481 = vmatpush1.msra.mxu0 0.0
        %1482 = vmatprep.subr.mxu0 0.0
        %1483 = vmatpush1.msra.mxu0 0.0
        %1484 = vmatprep.subr.mxu0 0.0
        %1485 = vmatpush1.msra.mxu0 0.0
        %1486 = vmatprep.subr.mxu0 0.0
        %1487 = vmatpush1.msra.mxu0 0.0
        %1488 = vmatprep.subr.mxu0 0.0
        %1489 = vmatpush1.msra.mxu0 0.0
        %1490 = vmatprep.subr.mxu0 0.0
        %1491 = vmatpush1.msra.mxu0 0.0
        %1492 = vmatprep.subr.mxu0 0.0
        %1493 = vmatpush1.msra.mxu0 0.0
        %1494 = vmatprep.subr.mxu0 0.0
        %1495 = vmatpush1.msra.mxu0 0.0
        %1496 = vmatprep.subr.mxu0 0.0
        %1497 = vmatpush1.msra.mxu0 0.0
        %1498 = vmatprep.subr.mxu0 0.0
        %1499 = vmatpush1.msra.mxu0 0.0
        %1500 = vmatprep.subr.mxu0 0.0
        %1501 = vmatpush1.msra.mxu0 0.0
        %1502 = vmatprep.subr.mxu0 0.0
        %1503 = vmatpush1.msra.mxu0 0.0
        %1504 = vmatprep.subr.mxu0 0.0
        %1505 = vmatpush1.msra.mxu0 0.0
        %1506 = vmatprep.subr.mxu0 0.0
        %1507 = vmatpush1.msra.mxu0 0.0
        %1508 = vmatprep.subr.mxu0 0.0
        %1509 = vmatpush1.msra.mxu0 0.0
        %1510 = vmatprep.subr.mxu0 0.0
        %1511 = vmatpush1.msra.mxu0 0.0
        %1512 = vmatprep.subr.mxu0 0.0
        %1513 = vmatpush1.msra.mxu0 0.0
        %1514 = vmatprep.subr.mxu0 0.0
        %1515 = vmatpush1.msra.mxu0 0.0
        %1516 = vmatprep.subr.mxu0 0.0
        %1517 = vmatpush1.msra.mxu0 0.0
        %1518 = vmatprep.subr.mxu0 0.0
        %1519 = vmatpush1.msra.mxu0 0.0
        %1520 = vmatprep.subr.mxu0 0.0
        %1521 = vmatpush1.msra.mxu0 0.0
        %1522 = vmatprep.subr.mxu0 0.0
        %1523 = vmatpush1.msra.mxu0 0.0
        %1524 = vmatprep.mubr.f32.mxu0 0.0
        %1525 = vmatmul.mubr.f32.gmra.mrb[0].mxu0 %v1458
        %v1526 = vpop.f32.mrb[0].mxu0
        %v1527 = vadd.f32 0.0, %v1526
        %v1528 = vpop.f32.mrb[0].mxu0
        %1529 = vdwg.mxu0
        %v1531 = vsel %vm645, %v1527, 0
        %1533 = vmatprep.subr.mxu0 0.0
        %1534 = vmatpush1.msra.mxu0 %v644
        %1535 = vmatprep.subr.mxu0 0.0
        %1536 = vmatpush1.msra.mxu0 0.0
        %1537 = vmatprep.subr.mxu0 0.0
        %1538 = vmatpush1.msra.mxu0 0.0
        %1539 = vmatprep.subr.mxu0 0.0
        %1540 = vmatpush1.msra.mxu0 0.0
        %1541 = vmatprep.subr.mxu0 0.0
        %1542 = vmatpush1.msra.mxu0 0.0
        %1543 = vmatprep.subr.mxu0 0.0
        %1544 = vmatpush1.msra.mxu0 0.0
        %1545 = vmatprep.subr.mxu0 0.0
        %1546 = vmatpush1.msra.mxu0 0.0
        %1547 = vmatprep.subr.mxu0 0.0
        %1548 = vmatpush1.msra.mxu0 0.0
        %1549 = vmatprep.subr.mxu0 0.0
        %1550 = vmatpush1.msra.mxu0 0.0
        %1551 = vmatprep.subr.mxu0 0.0
        %1552 = vmatpush1.msra.mxu0 0.0
        %1553 = vmatprep.subr.mxu0 0.0
        %1554 = vmatpush1.msra.mxu0 0.0
        %1555 = vmatprep.subr.mxu0 0.0
        %1556 = vmatpush1.msra.mxu0 0.0
        %1557 = vmatprep.subr.mxu0 0.0
        %1558 = vmatpush1.msra.mxu0 0.0
        %1559 = vmatprep.subr.mxu0 0.0
        %1560 = vmatpush1.msra.mxu0 0.0
        %1561 = vmatprep.subr.mxu0 0.0
        %1562 = vmatpush1.msra.mxu0 0.0
        %1563 = vmatprep.subr.mxu0 0.0
        %1564 = vmatpush1.msra.mxu0 0.0
        %1565 = vmatprep.subr.mxu0 0.0
        %1566 = vmatpush1.msra.mxu0 0.0
        %1567 = vmatprep.subr.mxu0 0.0
        %1568 = vmatpush1.msra.mxu0 0.0
        %1569 = vmatprep.subr.mxu0 0.0
        %1570 = vmatpush1.msra.mxu0 0.0
        %1571 = vmatprep.subr.mxu0 0.0
        %1572 = vmatpush1.msra.mxu0 0.0
        %1573 = vmatprep.subr.mxu0 0.0
        %1574 = vmatpush1.msra.mxu0 0.0
        %1575 = vmatprep.subr.mxu0 0.0
        %1576 = vmatpush1.msra.mxu0 0.0
        %1577 = vmatprep.subr.mxu0 0.0
        %1578 = vmatpush1.msra.mxu0 0.0
        %1579 = vmatprep.subr.mxu0 0.0
        %1580 = vmatpush1.msra.mxu0 0.0
        %1581 = vmatprep.subr.mxu0 0.0
        %1582 = vmatpush1.msra.mxu0 0.0
        %1583 = vmatprep.subr.mxu0 0.0
        %1584 = vmatpush1.msra.mxu0 0.0
        %1585 = vmatprep.subr.mxu0 0.0
        %1586 = vmatpush1.msra.mxu0 0.0
        %1587 = vmatprep.subr.mxu0 0.0
        %1588 = vmatpush1.msra.mxu0 0.0
        %1589 = vmatprep.subr.mxu0 0.0
        %1590 = vmatpush1.msra.mxu0 0.0
        %1591 = vmatprep.subr.mxu0 0.0
        %1592 = vmatpush1.msra.mxu0 0.0
        %1593 = vmatprep.subr.mxu0 0.0
        %1594 = vmatpush1.msra.mxu0 0.0
        %1595 = vmatprep.subr.mxu0 0.0
        %1596 = vmatpush1.msra.mxu0 0.0
        %1597 = vmatprep.mubr.f32.mxu0 0.0
        %1598 = vmatmul.mubr.f32.gmra.mrb[0].mxu0 %v1531
        %v1599 = vpop.f32.mrb[0].mxu0
        %v1600 = vadd.f32 0.0, %v1599
        %v1601 = vpop.f32.mrb[0].mxu0
        %1602 = vdwg.mxu0
        %v1603 = vadd.f32 %v1362, %v1600
        %v1604 = vadd.f32 %v379, %v1603
        %v1605 = vld [vmem:[%s7] sm:$0x1]
        %v1607 = vlaneseq
        %v1608 = vshrl.u32 %v1607, 7
        %v1609 = vsub.s32 0, %v1608
        %v1610 = vrot.slane %v1605, %v1609
        %v1612 = vadd.f32 %v1604, %v1610
        %1613 = vst.msk [vmem:[%s378] sm:$0xff] %vm382, %v1612
        %s1614 = sand.u32 %s208, 1
        %s1615 = scalar_lea.sflag [#allocation4], %s1614
        %s1616 = sand.u32 %s208, 1
        %s1617 = smul.addr %s1616, 8
        %s1618 = scalar_lea.vmem [#allocation11], %s1617
        // Predicated region
        $region73: #{tpu_custom_call.1} parent=51 // pred_check
          %p1619 = pneg %p218
        $region74: #{tpu_custom_call.1} parent=51 // pred_check_branch
          %1621 = sbr.rel (%p1619) target = $region76
        $region75: #{tpu_custom_call.1} parent=51 // pred_region
          %s1623 = ssub.s32 128, 128
          %1624 = vsyncadd %s1615, %s1623
          %s1625 = smul.addr %s27, 128
          %s1626 = scalar_lea.hbm %s8, %s1625
          %s1628 = sshll.u32 %s1618, 4
          %s1629 = int_to_ptr.vmem [resolvable:$true] %s1628
          %1631 = dma.vmem_to_hbm [thread:$0]  %s1629, 128, %s1626, %s1615
        $region76: #{tpu_custom_call.1} parent=51 // pred_fallthru
          _
      $region52: #{tpu_custom_call.1} parent=5 // pred_fallthru
        _
      %p1632 = scmp.le.s32.totalorder 2, %s22
      // Predicated region
      $region77: #{tpu_custom_call.1} parent=5 // pred_check
        %p1633 = pneg %p1632
      $region78: #{tpu_custom_call.1} parent=5 // pred_check_branch
        %1635 = sbr.rel (%p1633) target = $region80
      $region79: #{tpu_custom_call.1} parent=5 // pred_region
        %s1636 = ssub.s32 %s22, 2
        // Predicated region
        $region81: #{tpu_custom_call.1} parent=79 // pred_check
          %p1637 = pneg %p224
        $region82: #{tpu_custom_call.1} parent=79 // pred_check_branch
          %1639 = sbr.rel (%p1637) target = $region84
        $region83: #{tpu_custom_call.1} parent=79 // pred_region
          %s1640 = sand.u32 %s209, 1
          %s1641 = scalar_lea.sflag [#allocation4], %s1640
          %s1642 = sand.u32 %s209, 1
          %s1643 = smul.addr %s1642, 8
          %s1644 = scalar_lea.vmem [#allocation11], %s1643
          %1645 = dma.done %s1641, 128
        $region84: #{tpu_custom_call.1} parent=79 // pred_fallthru
          _
      $region80: #{tpu_custom_call.1} parent=5 // pred_fallthru
        _
    $region6: #{tpu_custom_call.1} parent=1 // loop_footer
      %s26 = sadd.s32 1, %s22
    $region7: #{tpu_custom_call.1} parent=1 // loop_footer_branch
      %21 = sbr.rel target = $region3
    $region8: #{tpu_custom_call.1} parent=1 // loop_exit
      _
    %1646 = vsyncpa [#allocation3], 1
    %s1647 = scalar_lea.sflag [#allocation3], 1
    %1648 = vsyncpa %s1647, 1
    %1649 = vsyncpa [#allocation6], 1
    %1650 = vsyncpa [#allocation9], 1
    %1651 = vsyncpa [#allocation4], 1
    %s1652 = scalar_lea.sflag [#allocation4], 1
    %1653 = vsyncpa %s1652, 1

</llo_original>
